<compile_context>
chip_gen: v5e
topology: v5e:2x2
jax: 0.10.0
libtpu: 0.0.40
codegen_flags: <defaults>
</compile_context>

<pallas_src>
import jax
import jax.numpy as jnp
from jax import lax
from jax.experimental import pallas as pl
from jax.experimental.pallas import tpu as pltpu


def lstm_kernel(x_ref, w_xg_ref, b_g_ref, w_hh_ref, w_out_ref, b_out_ref,
                y_ref, hseq_ref):
    N = x_ref.shape[0]
    H = w_hh_ref.shape[0]
    H3 = 3 * H

    # 1) fused (inputLayer + input->gate) projection for every timestep in one MXU matmul:
    #    bf16 x bf16 -> f32 accumulate, result kept in vregs (N*4H f32 is a handful of vregs).
    xg = (jnp.dot(x_ref[...].astype(jnp.bfloat16), w_xg_ref[...],
                  preferred_element_type=jnp.float32)
          + b_g_ref[...])

    # zero initial hidden / cell state (PyTorch default when no (h0, c0) is given)
    h_bf = jnp.zeros((1, H), jnp.bfloat16)   # bf16 copy of h, fed to the recurrence matmul
    c = jnp.zeros((1, H), jnp.float32)

    # 2) sequential LSTM recurrence over time (batch = 1), fully unrolled: static slices
    #    everywhere, h/c carried in registers, w_hh streamed from VMEM each step (see header).
    for t in range(N):
        gates = xg[t:t + 1, :] + jnp.dot(h_bf, w_hh_ref[...],
                                         preferred_element_type=jnp.float32)
        # columns are (i | f | o) after the init-time permute; one EUP tanh pass over 3 vregs:
        # sigmoid(x) = 0.5 * tanh(0.5 * x) + 0.5  (exact identity)
        sig = 0.5 * jnp.tanh(0.5 * gates[:, 0:H3]) + 0.5
        g = jnp.tanh(gates[:, H3:])
        i = sig[:, 0:H]
        f = sig[:, H:2 * H]
        o = sig[:, 2 * H:H3]
        c = f * c + i * g
        h = o * jnp.tanh(c)
        h_bf = h.astype(jnp.bfloat16)
        hseq_ref[t:t + 1, :] = h                 # static-row f32 store, off the critical path

    # 3) output linear layer: (N, H) @ (H, S) + b_out  (bf16 MXU inputs, f32 accumulate)
    y_ref[...] = (jnp.dot(hseq_ref[...].astype(jnp.bfloat16), w_out_ref[...],
                          preferred_element_type=jnp.float32)
                  + b_out_ref[...]).astype(y_ref.dtype)


@jax.jit
def lstm_forward(x, w_xg, b_g, w_hh, w_out, b_out):
    N, S = x.shape
    H = w_hh.shape[0]
    vmem = pl.BlockSpec(memory_space=pltpu.MemorySpace.VMEM)
    return pl.pallas_call(
        lstm_kernel,
        out_shape=jax.ShapeDtypeStruct((N, S), x.dtype),
        in_specs=[vmem] * 6,
        out_specs=vmem,
        scratch_shapes=[
            pltpu.VMEM((N, H), jnp.float32),   # hidden-state sequence for the output matmul
        ],
    )(x, w_xg, b_g, w_hh, w_out, b_out)


def prepare_params(w_in, b_in, w_ih, b_ih, w_hh, b_hh, w_out, b_out):
    """One-time (init) fold: fuse inputLayer into the gate projection, permute gate columns
    from PyTorch order (i, f, g, o) to (i, f, o, g) so the sigmoid gates are contiguous, and
    cast the matmul weights to bf16 (biases stay f32; all elementwise math stays f32)."""
    H = w_in.shape[1]
    perm = jnp.concatenate([jnp.arange(0, H), jnp.arange(H, 2 * H),
                            jnp.arange(3 * H, 4 * H), jnp.arange(2 * H, 3 * H)])
    w_ih_p = w_ih[:, perm]
    w_hh_p = w_hh[:, perm]
    b_ih_p = b_ih[:, perm]
    b_hh_p = b_hh[:, perm]
    w_xg = (w_in @ w_ih_p).astype(jnp.bfloat16)                    # (S, 4H) bf16
    b_g = b_in @ w_ih_p + b_ih_p + b_hh_p                          # (1, 4H) f32
    return (w_xg, b_g, w_hh_p.astype(jnp.bfloat16),
            w_out.astype(jnp.bfloat16), b_out)


def lstm_ref(x, w_in, b_in, w_ih, b_ih, w_hh, b_hh, w_out, b_out):
    """Pure-JAX f32 reference matching the original (unfused) module math."""
    H = w_in.shape[1]
    h1 = x @ w_in + b_in[0]

    def step(carry, xt):
        h, c = carry
        gates = xt @ w_ih + b_ih[0] + h @ w_hh + b_hh[0]
        i, f, g, o = jnp.split(gates, 4)
        i = jax.nn.sigmoid(i)
        f = jax.nn.sigmoid(f)
        g = jnp.tanh(g)
        o = jax.nn.sigmoid(o)
        c = f * c + i * g
        h = o * jnp.tanh(c)
        return (h, c), h

    (_, _), hs = lax.scan(step, (jnp.zeros(H), jnp.zeros(H)), h1)
    return hs @ w_out + b_out[0]


def init_params(key, state_size, hidden_size):
    ks = jax.random.split(key, 9)
    kin = 1.0 / jnp.sqrt(state_size)
    kh = 1.0 / jnp.sqrt(hidden_size)
    u = lambda k, shape, b: jax.random.uniform(k, shape, jnp.float32, -b, b)
    w_in = u(ks[0], (state_size, hidden_size), kin)
    b_in = u(ks[1], (1, hidden_size), kin)
    w_ih = u(ks[2], (hidden_size, 4 * hidden_size), kh)
    b_ih = u(ks[3], (1, 4 * hidden_size), kh)
    w_hh = u(ks[4], (hidden_size, 4 * hidden_size), kh)
    b_hh = u(ks[5], (1, 4 * hidden_size), kh)
    w_out = u(ks[6], (hidden_size, state_size), kh)
    b_out = u(ks[7], (1, state_size), kh)
    return w_in, b_in, w_ih, b_ih, w_hh, b_hh, w_out, b_out


if __name__ == "__main__":
    state_size = 16    # input/output feature size
    hidden_size = 128  # LSTM hidden size (small stand-in for 512)
    seq_len = 8        # number of input rows -> LSTM sequence length (batch = 1)

    key = jax.random.PRNGKey(0)
    kx, kp = jax.random.split(key)
    x = jax.random.normal(kx, (seq_len, state_size), jnp.float32)
    raw_params = init_params(kp, state_size, hidden_size)

    # one-time parameter prep (fusion + gate permutation + bf16 cast) — not on the per-call path
    fused_params = prepare_params(*raw_params)
    fused_params = jax.tree_util.tree_map(jax.block_until_ready, fused_params)

    y = lstm_forward(x, *fused_params)
    jax.block_until_ready(y)

    y_ref = lstm_ref(x, *raw_params)
    assert y.shape == (seq_len, state_size)
    # tolerance relaxed vs the f32 reference because matmul weights/inputs are bf16 in-kernel
    assert jnp.allclose(y, y_ref, rtol=2e-2, atol=2e-2), "mismatch vs JAX reference"

    print("KERNEL_OK")
</pallas_src>

<mosaic_0001>
module attributes {stable_mosaic.version = 11 : i64} {
  func.func @lstm_kernel(%arg0: memref<8x16xf32, #tpu.memory_space<vmem>>, %arg1: memref<16x512xbf16, #tpu.memory_space<vmem>>, %arg2: memref<1x512xf32, #tpu.memory_space<vmem>>, %arg3: memref<128x512xbf16, #tpu.memory_space<vmem>>, %arg4: memref<128x16xbf16, #tpu.memory_space<vmem>>, %arg5: memref<1x16xf32, #tpu.memory_space<vmem>>, %arg6: memref<8x16xf32, #tpu.memory_space<vmem>>, %arg7: memref<8x128xf32, #tpu.memory_space<vmem>>) attributes {dimension_semantics = [], scalar_prefetch = 0 : i64, scratch_operands = 1 : i64, tpu.core_type = #tpu.core_type<tc>} {
    %c0 = arith.constant 0 : index
    %c0_0 = arith.constant 0 : index
    %0 = vector.load %arg0[%c0, %c0_0] : memref<8x16xf32, #tpu.memory_space<vmem>>, vector<8x16xf32>
    %1 = arith.truncf %0 : vector<8x16xf32> to vector<8x16xbf16>
    %c0_1 = arith.constant 0 : index
    %c0_2 = arith.constant 0 : index
    %2 = vector.load %arg1[%c0_1, %c0_2] : memref<16x512xbf16, #tpu.memory_space<vmem>>, vector<16x512xbf16>
    %cst = arith.constant dense<0.000000e+00> : vector<8x512xf32>
    %3 = tpu.matmul %1, %2, %cst {dimension_numbers = #tpu.dot_dimension_numbers<[1], [0], [0], [1], [0, 0, 1, 1], [], []>} : vector<8x16xbf16>, vector<16x512xbf16>, vector<8x512xf32> -> vector<8x512xf32>
    %c0_3 = arith.constant 0 : index
    %c0_4 = arith.constant 0 : index
    %4 = vector.load %arg2[%c0_3, %c0_4] : memref<1x512xf32, #tpu.memory_space<vmem>>, vector<1x512xf32>
    %5 = vector.broadcast %4 : vector<1x512xf32> to vector<8x512xf32>
    %6 = arith.addf %3, %5 : vector<8x512xf32>
    %cst_5 = arith.constant 0.000000e+00 : bf16
    %7 = vector.broadcast %cst_5 : bf16 to vector<1x128xbf16>
    %cst_6 = arith.constant 0.000000e+00 : f32
    %8 = vector.broadcast %cst_6 : f32 to vector<1x128xf32>
    %9 = vector.extract_strided_slice %6 {offsets = [0, 0], sizes = [1, 512], strides = [1, 1]} : vector<8x512xf32> to vector<1x512xf32>
    %c0_7 = arith.constant 0 : index
    %c0_8 = arith.constant 0 : index
    %10 = vector.load %arg3[%c0_7, %c0_8] : memref<128x512xbf16, #tpu.memory_space<vmem>>, vector<128x512xbf16>
    %cst_9 = arith.constant dense<0.000000e+00> : vector<1x512xf32>
    %11 = tpu.matmul %7, %10, %cst_9 {dimension_numbers = #tpu.dot_dimension_numbers<[1], [0], [0], [1], [0, 0, 1, 1], [], []>} : vector<1x128xbf16>, vector<128x512xbf16>, vector<1x512xf32> -> vector<1x512xf32>
    %12 = arith.addf %9, %11 : vector<1x512xf32>
    %13 = vector.extract_strided_slice %12 {offsets = [0, 0], sizes = [1, 384], strides = [1, 1]} : vector<1x512xf32> to vector<1x384xf32>
    %cst_10 = arith.constant 5.000000e-01 : f32
    %14 = vector.broadcast %cst_10 : f32 to vector<1x384xf32>
    %15 = arith.mulf %14, %13 : vector<1x384xf32>
    %16 = math.tanh %15 : vector<1x384xf32>
    %cst_11 = arith.constant 5.000000e-01 : f32
    %17 = vector.broadcast %cst_11 : f32 to vector<1x384xf32>
    %18 = arith.mulf %17, %16 : vector<1x384xf32>
    %cst_12 = arith.constant 5.000000e-01 : f32
    %19 = vector.broadcast %cst_12 : f32 to vector<1x384xf32>
    %20 = arith.addf %18, %19 : vector<1x384xf32>
    %21 = vector.extract_strided_slice %12 {offsets = [0, 384], sizes = [1, 128], strides = [1, 1]} : vector<1x512xf32> to vector<1x128xf32>
    %22 = math.tanh %21 : vector<1x128xf32>
    %23 = vector.extract_strided_slice %20 {offsets = [0, 0], sizes = [1, 128], strides = [1, 1]} : vector<1x384xf32> to vector<1x128xf32>
    %24 = vector.extract_strided_slice %20 {offsets = [0, 128], sizes = [1, 128], strides = [1, 1]} : vector<1x384xf32> to vector<1x128xf32>
    %25 = vector.extract_strided_slice %20 {offsets = [0, 256], sizes = [1, 128], strides = [1, 1]} : vector<1x384xf32> to vector<1x128xf32>
    %26 = arith.mulf %24, %8 : vector<1x128xf32>
    %27 = arith.mulf %23, %22 : vector<1x128xf32>
    %28 = arith.addf %26, %27 : vector<1x128xf32>
    %29 = math.tanh %28 : vector<1x128xf32>
    %30 = arith.mulf %25, %29 : vector<1x128xf32>
    %31 = arith.truncf %30 : vector<1x128xf32> to vector<1x128xbf16>
    %c0_13 = arith.constant 0 : index
    %c0_14 = arith.constant 0 : index
    %32 = vector.load %arg7[%c0_13, %c0_14] : memref<8x128xf32, #tpu.memory_space<vmem>>, vector<1x128xf32>
    tpu.vector_store %arg7[%c0_13, %c0_14], %30 {strides = array<i32>} : memref<8x128xf32, #tpu.memory_space<vmem>>, vector<1x128xf32>,
    %33 = vector.extract_strided_slice %6 {offsets = [1, 0], sizes = [1, 512], strides = [1, 1]} : vector<8x512xf32> to vector<1x512xf32>
    %c0_15 = arith.constant 0 : index
    %c0_16 = arith.constant 0 : index
    %34 = vector.load %arg3[%c0_15, %c0_16] : memref<128x512xbf16, #tpu.memory_space<vmem>>, vector<128x512xbf16>
    %cst_17 = arith.constant dense<0.000000e+00> : vector<1x512xf32>
    %35 = tpu.matmul %31, %34, %cst_17 {dimension_numbers = #tpu.dot_dimension_numbers<[1], [0], [0], [1], [0, 0, 1, 1], [], []>} : vector<1x128xbf16>, vector<128x512xbf16>, vector<1x512xf32> -> vector<1x512xf32>
    %36 = arith.addf %33, %35 : vector<1x512xf32>
    %37 = vector.extract_strided_slice %36 {offsets = [0, 0], sizes = [1, 384], strides = [1, 1]} : vector<1x512xf32> to vector<1x384xf32>
    %cst_18 = arith.constant 5.000000e-01 : f32
    %38 = vector.broadcast %cst_18 : f32 to vector<1x384xf32>
    %39 = arith.mulf %38, %37 : vector<1x384xf32>
    %40 = math.tanh %39 : vector<1x384xf32>
    %cst_19 = arith.constant 5.000000e-01 : f32
    %41 = vector.broadcast %cst_19 : f32 to vector<1x384xf32>
    %42 = arith.mulf %41, %40 : vector<1x384xf32>
    %cst_20 = arith.constant 5.000000e-01 : f32
    %43 = vector.broadcast %cst_20 : f32 to vector<1x384xf32>
    %44 = arith.addf %42, %43 : vector<1x384xf32>
    %45 = vector.extract_strided_slice %36 {offsets = [0, 384], sizes = [1, 128], strides = [1, 1]} : vector<1x512xf32> to vector<1x128xf32>
    %46 = math.tanh %45 : vector<1x128xf32>
    %47 = vector.extract_strided_slice %44 {offsets = [0, 0], sizes = [1, 128], strides = [1, 1]} : vector<1x384xf32> to vector<1x128xf32>
    %48 = vector.extract_strided_slice %44 {offsets = [0, 128], sizes = [1, 128], strides = [1, 1]} : vector<1x384xf32> to vector<1x128xf32>
    %49 = vector.extract_strided_slice %44 {offsets = [0, 256], sizes = [1, 128], strides = [1, 1]} : vector<1x384xf32> to vector<1x128xf32>
    %50 = arith.mulf %48, %28 : vector<1x128xf32>
    %51 = arith.mulf %47, %46 : vector<1x128xf32>
    %52 = arith.addf %50, %51 : vector<1x128xf32>
    %53 = math.tanh %52 : vector<1x128xf32>
    %54 = arith.mulf %49, %53 : vector<1x128xf32>
    %55 = arith.truncf %54 : vector<1x128xf32> to vector<1x128xbf16>
    %c1 = arith.constant 1 : index
    %c0_21 = arith.constant 0 : index
    %56 = vector.load %arg7[%c1, %c0_21] : memref<8x128xf32, #tpu.memory_space<vmem>>, vector<1x128xf32>
    tpu.vector_store %arg7[%c1, %c0_21], %54 {strides = array<i32>} : memref<8x128xf32, #tpu.memory_space<vmem>>, vector<1x128xf32>,
    %57 = vector.extract_strided_slice %6 {offsets = [2, 0], sizes = [1, 512], strides = [1, 1]} : vector<8x512xf32> to vector<1x512xf32>
    %c0_22 = arith.constant 0 : index
    %c0_23 = arith.constant 0 : index
    %58 = vector.load %arg3[%c0_22, %c0_23] : memref<128x512xbf16, #tpu.memory_space<vmem>>, vector<128x512xbf16>
    %cst_24 = arith.constant dense<0.000000e+00> : vector<1x512xf32>
    %59 = tpu.matmul %55, %58, %cst_24 {dimension_numbers = #tpu.dot_dimension_numbers<[1], [0], [0], [1], [0, 0, 1, 1], [], []>} : vector<1x128xbf16>, vector<128x512xbf16>, vector<1x512xf32> -> vector<1x512xf32>
    %60 = arith.addf %57, %59 : vector<1x512xf32>
    %61 = vector.extract_strided_slice %60 {offsets = [0, 0], sizes = [1, 384], strides = [1, 1]} : vector<1x512xf32> to vector<1x384xf32>
    %cst_25 = arith.constant 5.000000e-01 : f32
    %62 = vector.broadcast %cst_25 : f32 to vector<1x384xf32>
    %63 = arith.mulf %62, %61 : vector<1x384xf32>
    %64 = math.tanh %63 : vector<1x384xf32>
    %cst_26 = arith.constant 5.000000e-01 : f32
    %65 = vector.broadcast %cst_26 : f32 to vector<1x384xf32>
    %66 = arith.mulf %65, %64 : vector<1x384xf32>
    %cst_27 = arith.constant 5.000000e-01 : f32
    %67 = vector.broadcast %cst_27 : f32 to vector<1x384xf32>
    %68 = arith.addf %66, %67 : vector<1x384xf32>
    %69 = vector.extract_strided_slice %60 {offsets = [0, 384], sizes = [1, 128], strides = [1, 1]} : vector<1x512xf32> to vector<1x128xf32>
    %70 = math.tanh %69 : vector<1x128xf32>
    %71 = vector.extract_strided_slice %68 {offsets = [0, 0], sizes = [1, 128], strides = [1, 1]} : vector<1x384xf32> to vector<1x128xf32>
    %72 = vector.extract_strided_slice %68 {offsets = [0, 128], sizes = [1, 128], strides = [1, 1]} : vector<1x384xf32> to vector<1x128xf32>
    %73 = vector.extract_strided_slice %68 {offsets = [0, 256], sizes = [1, 128], strides = [1, 1]} : vector<1x384xf32> to vector<1x128xf32>
    %74 = arith.mulf %72, %52 : vector<1x128xf32>
    %75 = arith.mulf %71, %70 : vector<1x128xf32>
    %76 = arith.addf %74, %75 : vector<1x128xf32>
    %77 = math.tanh %76 : vector<1x128xf32>
    %78 = arith.mulf %73, %77 : vector<1x128xf32>
    %79 = arith.truncf %78 : vector<1x128xf32> to vector<1x128xbf16>
    %c2 = arith.constant 2 : index
    %c0_28 = arith.constant 0 : index
    %80 = vector.load %arg7[%c2, %c0_28] : memref<8x128xf32, #tpu.memory_space<vmem>>, vector<1x128xf32>
    tpu.vector_store %arg7[%c2, %c0_28], %78 {strides = array<i32>} : memref<8x128xf32, #tpu.memory_space<vmem>>, vector<1x128xf32>,
    %81 = vector.extract_strided_slice %6 {offsets = [3, 0], sizes = [1, 512], strides = [1, 1]} : vector<8x512xf32> to vector<1x512xf32>
    %c0_29 = arith.constant 0 : index
    %c0_30 = arith.constant 0 : index
    %82 = vector.load %arg3[%c0_29, %c0_30] : memref<128x512xbf16, #tpu.memory_space<vmem>>, vector<128x512xbf16>
    %cst_31 = arith.constant dense<0.000000e+00> : vector<1x512xf32>
    %83 = tpu.matmul %79, %82, %cst_31 {dimension_numbers = #tpu.dot_dimension_numbers<[1], [0], [0], [1], [0, 0, 1, 1], [], []>} : vector<1x128xbf16>, vector<128x512xbf16>, vector<1x512xf32> -> vector<1x512xf32>
    %84 = arith.addf %81, %83 : vector<1x512xf32>
    %85 = vector.extract_strided_slice %84 {offsets = [0, 0], sizes = [1, 384], strides = [1, 1]} : vector<1x512xf32> to vector<1x384xf32>
    %cst_32 = arith.constant 5.000000e-01 : f32
    %86 = vector.broadcast %cst_32 : f32 to vector<1x384xf32>
    %87 = arith.mulf %86, %85 : vector<1x384xf32>
    %88 = math.tanh %87 : vector<1x384xf32>
    %cst_33 = arith.constant 5.000000e-01 : f32
    %89 = vector.broadcast %cst_33 : f32 to vector<1x384xf32>
    %90 = arith.mulf %89, %88 : vector<1x384xf32>
    %cst_34 = arith.constant 5.000000e-01 : f32
    %91 = vector.broadcast %cst_34 : f32 to vector<1x384xf32>
    %92 = arith.addf %90, %91 : vector<1x384xf32>
    %93 = vector.extract_strided_slice %84 {offsets = [0, 384], sizes = [1, 128], strides = [1, 1]} : vector<1x512xf32> to vector<1x128xf32>
    %94 = math.tanh %93 : vector<1x128xf32>
    %95 = vector.extract_strided_slice %92 {offsets = [0, 0], sizes = [1, 128], strides = [1, 1]} : vector<1x384xf32> to vector<1x128xf32>
    %96 = vector.extract_strided_slice %92 {offsets = [0, 128], sizes = [1, 128], strides = [1, 1]} : vector<1x384xf32> to vector<1x128xf32>
    %97 = vector.extract_strided_slice %92 {offsets = [0, 256], sizes = [1, 128], strides = [1, 1]} : vector<1x384xf32> to vector<1x128xf32>
    %98 = arith.mulf %96, %76 : vector<1x128xf32>
    %99 = arith.mulf %95, %94 : vector<1x128xf32>
    %100 = arith.addf %98, %99 : vector<1x128xf32>
    %101 = math.tanh %100 : vector<1x128xf32>
    %102 = arith.mulf %97, %101 : vector<1x128xf32>
    %103 = arith.truncf %102 : vector<1x128xf32> to vector<1x128xbf16>
    %c3 = arith.constant 3 : index
    %c0_35 = arith.constant 0 : index
    %104 = vector.load %arg7[%c3, %c0_35] : memref<8x128xf32, #tpu.memory_space<vmem>>, vector<1x128xf32>
    tpu.vector_store %arg7[%c3, %c0_35], %102 {strides = array<i32>} : memref<8x128xf32, #tpu.memory_space<vmem>>, vector<1x128xf32>,
    %105 = vector.extract_strided_slice %6 {offsets = [4, 0], sizes = [1, 512], strides = [1, 1]} : vector<8x512xf32> to vector<1x512xf32>
    %c0_36 = arith.constant 0 : index
    %c0_37 = arith.constant 0 : index
    %106 = vector.load %arg3[%c0_36, %c0_37] : memref<128x512xbf16, #tpu.memory_space<vmem>>, vector<128x512xbf16>
    %cst_38 = arith.constant dense<0.000000e+00> : vector<1x512xf32>
    %107 = tpu.matmul %103, %106, %cst_38 {dimension_numbers = #tpu.dot_dimension_numbers<[1], [0], [0], [1], [0, 0, 1, 1], [], []>} : vector<1x128xbf16>, vector<128x512xbf16>, vector<1x512xf32> -> vector<1x512xf32>
    %108 = arith.addf %105, %107 : vector<1x512xf32>
    %109 = vector.extract_strided_slice %108 {offsets = [0, 0], sizes = [1, 384], strides = [1, 1]} : vector<1x512xf32> to vector<1x384xf32>
    %cst_39 = arith.constant 5.000000e-01 : f32
    %110 = vector.broadcast %cst_39 : f32 to vector<1x384xf32>
    %111 = arith.mulf %110, %109 : vector<1x384xf32>
    %112 = math.tanh %111 : vector<1x384xf32>
    %cst_40 = arith.constant 5.000000e-01 : f32
    %113 = vector.broadcast %cst_40 : f32 to vector<1x384xf32>
    %114 = arith.mulf %113, %112 : vector<1x384xf32>
    %cst_41 = arith.constant 5.000000e-01 : f32
    %115 = vector.broadcast %cst_41 : f32 to vector<1x384xf32>
    %116 = arith.addf %114, %115 : vector<1x384xf32>
    %117 = vector.extract_strided_slice %108 {offsets = [0, 384], sizes = [1, 128], strides = [1, 1]} : vector<1x512xf32> to vector<1x128xf32>
    %118 = math.tanh %117 : vector<1x128xf32>
    %119 = vector.extract_strided_slice %116 {offsets = [0, 0], sizes = [1, 128], strides = [1, 1]} : vector<1x384xf32> to vector<1x128xf32>
    %120 = vector.extract_strided_slice %116 {offsets = [0, 128], sizes = [1, 128], strides = [1, 1]} : vector<1x384xf32> to vector<1x128xf32>
    %121 = vector.extract_strided_slice %116 {offsets = [0, 256], sizes = [1, 128], strides = [1, 1]} : vector<1x384xf32> to vector<1x128xf32>
    %122 = arith.mulf %120, %100 : vector<1x128xf32>
    %123 = arith.mulf %119, %118 : vector<1x128xf32>
    %124 = arith.addf %122, %123 : vector<1x128xf32>
    %125 = math.tanh %124 : vector<1x128xf32>
    %126 = arith.mulf %121, %125 : vector<1x128xf32>
    %127 = arith.truncf %126 : vector<1x128xf32> to vector<1x128xbf16>
    %c4 = arith.constant 4 : index
    %c0_42 = arith.constant 0 : index
    %128 = vector.load %arg7[%c4, %c0_42] : memref<8x128xf32, #tpu.memory_space<vmem>>, vector<1x128xf32>
    tpu.vector_store %arg7[%c4, %c0_42], %126 {strides = array<i32>} : memref<8x128xf32, #tpu.memory_space<vmem>>, vector<1x128xf32>,
    %129 = vector.extract_strided_slice %6 {offsets = [5, 0], sizes = [1, 512], strides = [1, 1]} : vector<8x512xf32> to vector<1x512xf32>
    %c0_43 = arith.constant 0 : index
    %c0_44 = arith.constant 0 : index
    %130 = vector.load %arg3[%c0_43, %c0_44] : memref<128x512xbf16, #tpu.memory_space<vmem>>, vector<128x512xbf16>
    %cst_45 = arith.constant dense<0.000000e+00> : vector<1x512xf32>
    %131 = tpu.matmul %127, %130, %cst_45 {dimension_numbers = #tpu.dot_dimension_numbers<[1], [0], [0], [1], [0, 0, 1, 1], [], []>} : vector<1x128xbf16>, vector<128x512xbf16>, vector<1x512xf32> -> vector<1x512xf32>
    %132 = arith.addf %129, %131 : vector<1x512xf32>
    %133 = vector.extract_strided_slice %132 {offsets = [0, 0], sizes = [1, 384], strides = [1, 1]} : vector<1x512xf32> to vector<1x384xf32>
    %cst_46 = arith.constant 5.000000e-01 : f32
    %134 = vector.broadcast %cst_46 : f32 to vector<1x384xf32>
    %135 = arith.mulf %134, %133 : vector<1x384xf32>
    %136 = math.tanh %135 : vector<1x384xf32>
    %cst_47 = arith.constant 5.000000e-01 : f32
    %137 = vector.broadcast %cst_47 : f32 to vector<1x384xf32>
    %138 = arith.mulf %137, %136 : vector<1x384xf32>
    %cst_48 = arith.constant 5.000000e-01 : f32
    %139 = vector.broadcast %cst_48 : f32 to vector<1x384xf32>
    %140 = arith.addf %138, %139 : vector<1x384xf32>
    %141 = vector.extract_strided_slice %132 {offsets = [0, 384], sizes = [1, 128], strides = [1, 1]} : vector<1x512xf32> to vector<1x128xf32>
    %142 = math.tanh %141 : vector<1x128xf32>
    %143 = vector.extract_strided_slice %140 {offsets = [0, 0], sizes = [1, 128], strides = [1, 1]} : vector<1x384xf32> to vector<1x128xf32>
    %144 = vector.extract_strided_slice %140 {offsets = [0, 128], sizes = [1, 128], strides = [1, 1]} : vector<1x384xf32> to vector<1x128xf32>
    %145 = vector.extract_strided_slice %140 {offsets = [0, 256], sizes = [1, 128], strides = [1, 1]} : vector<1x384xf32> to vector<1x128xf32>
    %146 = arith.mulf %144, %124 : vector<1x128xf32>
    %147 = arith.mulf %143, %142 : vector<1x128xf32>
    %148 = arith.addf %146, %147 : vector<1x128xf32>
    %149 = math.tanh %148 : vector<1x128xf32>
    %150 = arith.mulf %145, %149 : vector<1x128xf32>
    %151 = arith.truncf %150 : vector<1x128xf32> to vector<1x128xbf16>
    %c5 = arith.constant 5 : index
    %c0_49 = arith.constant 0 : index
    %152 = vector.load %arg7[%c5, %c0_49] : memref<8x128xf32, #tpu.memory_space<vmem>>, vector<1x128xf32>
    tpu.vector_store %arg7[%c5, %c0_49], %150 {strides = array<i32>} : memref<8x128xf32, #tpu.memory_space<vmem>>, vector<1x128xf32>,
    %153 = vector.extract_strided_slice %6 {offsets = [6, 0], sizes = [1, 512], strides = [1, 1]} : vector<8x512xf32> to vector<1x512xf32>
    %c0_50 = arith.constant 0 : index
    %c0_51 = arith.constant 0 : index
    %154 = vector.load %arg3[%c0_50, %c0_51] : memref<128x512xbf16, #tpu.memory_space<vmem>>, vector<128x512xbf16>
    %cst_52 = arith.constant dense<0.000000e+00> : vector<1x512xf32>
    %155 = tpu.matmul %151, %154, %cst_52 {dimension_numbers = #tpu.dot_dimension_numbers<[1], [0], [0], [1], [0, 0, 1, 1], [], []>} : vector<1x128xbf16>, vector<128x512xbf16>, vector<1x512xf32> -> vector<1x512xf32>
    %156 = arith.addf %153, %155 : vector<1x512xf32>
    %157 = vector.extract_strided_slice %156 {offsets = [0, 0], sizes = [1, 384], strides = [1, 1]} : vector<1x512xf32> to vector<1x384xf32>
    %cst_53 = arith.constant 5.000000e-01 : f32
    %158 = vector.broadcast %cst_53 : f32 to vector<1x384xf32>
    %159 = arith.mulf %158, %157 : vector<1x384xf32>
    %160 = math.tanh %159 : vector<1x384xf32>
    %cst_54 = arith.constant 5.000000e-01 : f32
    %161 = vector.broadcast %cst_54 : f32 to vector<1x384xf32>
    %162 = arith.mulf %161, %160 : vector<1x384xf32>
    %cst_55 = arith.constant 5.000000e-01 : f32
    %163 = vector.broadcast %cst_55 : f32 to vector<1x384xf32>
    %164 = arith.addf %162, %163 : vector<1x384xf32>
    %165 = vector.extract_strided_slice %156 {offsets = [0, 384], sizes = [1, 128], strides = [1, 1]} : vector<1x512xf32> to vector<1x128xf32>
    %166 = math.tanh %165 : vector<1x128xf32>
    %167 = vector.extract_strided_slice %164 {offsets = [0, 0], sizes = [1, 128], strides = [1, 1]} : vector<1x384xf32> to vector<1x128xf32>
    %168 = vector.extract_strided_slice %164 {offsets = [0, 128], sizes = [1, 128], strides = [1, 1]} : vector<1x384xf32> to vector<1x128xf32>
    %169 = vector.extract_strided_slice %164 {offsets = [0, 256], sizes = [1, 128], strides = [1, 1]} : vector<1x384xf32> to vector<1x128xf32>
    %170 = arith.mulf %168, %148 : vector<1x128xf32>
    %171 = arith.mulf %167, %166 : vector<1x128xf32>
    %172 = arith.addf %170, %171 : vector<1x128xf32>
    %173 = math.tanh %172 : vector<1x128xf32>
    %174 = arith.mulf %169, %173 : vector<1x128xf32>
    %175 = arith.truncf %174 : vector<1x128xf32> to vector<1x128xbf16>
    %c6 = arith.constant 6 : index
    %c0_56 = arith.constant 0 : index
    %176 = vector.load %arg7[%c6, %c0_56] : memref<8x128xf32, #tpu.memory_space<vmem>>, vector<1x128xf32>
    tpu.vector_store %arg7[%c6, %c0_56], %174 {strides = array<i32>} : memref<8x128xf32, #tpu.memory_space<vmem>>, vector<1x128xf32>,
    %177 = vector.extract_strided_slice %6 {offsets = [7, 0], sizes = [1, 512], strides = [1, 1]} : vector<8x512xf32> to vector<1x512xf32>
    %c0_57 = arith.constant 0 : index
    %c0_58 = arith.constant 0 : index
    %178 = vector.load %arg3[%c0_57, %c0_58] : memref<128x512xbf16, #tpu.memory_space<vmem>>, vector<128x512xbf16>
    %cst_59 = arith.constant dense<0.000000e+00> : vector<1x512xf32>
    %179 = tpu.matmul %175, %178, %cst_59 {dimension_numbers = #tpu.dot_dimension_numbers<[1], [0], [0], [1], [0, 0, 1, 1], [], []>} : vector<1x128xbf16>, vector<128x512xbf16>, vector<1x512xf32> -> vector<1x512xf32>
    %180 = arith.addf %177, %179 : vector<1x512xf32>
    %181 = vector.extract_strided_slice %180 {offsets = [0, 0], sizes = [1, 384], strides = [1, 1]} : vector<1x512xf32> to vector<1x384xf32>
    %cst_60 = arith.constant 5.000000e-01 : f32
    %182 = vector.broadcast %cst_60 : f32 to vector<1x384xf32>
    %183 = arith.mulf %182, %181 : vector<1x384xf32>
    %184 = math.tanh %183 : vector<1x384xf32>
    %cst_61 = arith.constant 5.000000e-01 : f32
    %185 = vector.broadcast %cst_61 : f32 to vector<1x384xf32>
    %186 = arith.mulf %185, %184 : vector<1x384xf32>
    %cst_62 = arith.constant 5.000000e-01 : f32
    %187 = vector.broadcast %cst_62 : f32 to vector<1x384xf32>
    %188 = arith.addf %186, %187 : vector<1x384xf32>
    %189 = vector.extract_strided_slice %180 {offsets = [0, 384], sizes = [1, 128], strides = [1, 1]} : vector<1x512xf32> to vector<1x128xf32>
    %190 = math.tanh %189 : vector<1x128xf32>
    %191 = vector.extract_strided_slice %188 {offsets = [0, 0], sizes = [1, 128], strides = [1, 1]} : vector<1x384xf32> to vector<1x128xf32>
    %192 = vector.extract_strided_slice %188 {offsets = [0, 128], sizes = [1, 128], strides = [1, 1]} : vector<1x384xf32> to vector<1x128xf32>
    %193 = vector.extract_strided_slice %188 {offsets = [0, 256], sizes = [1, 128], strides = [1, 1]} : vector<1x384xf32> to vector<1x128xf32>
    %194 = arith.mulf %192, %172 : vector<1x128xf32>
    %195 = arith.mulf %191, %190 : vector<1x128xf32>
    %196 = arith.addf %194, %195 : vector<1x128xf32>
    %197 = math.tanh %196 : vector<1x128xf32>
    %198 = arith.mulf %193, %197 : vector<1x128xf32>
    %c7 = arith.constant 7 : index
    %c0_63 = arith.constant 0 : index
    %199 = vector.load %arg7[%c7, %c0_63] : memref<8x128xf32, #tpu.memory_space<vmem>>, vector<1x128xf32>
    tpu.vector_store %arg7[%c7, %c0_63], %198 {strides = array<i32>} : memref<8x128xf32, #tpu.memory_space<vmem>>, vector<1x128xf32>,
    %c0_64 = arith.constant 0 : index
    %c0_65 = arith.constant 0 : index
    %200 = vector.load %arg7[%c0_64, %c0_65] : memref<8x128xf32, #tpu.memory_space<vmem>>, vector<8x128xf32>
    %201 = arith.truncf %200 : vector<8x128xf32> to vector<8x128xbf16>
    %c0_66 = arith.constant 0 : index
    %c0_67 = arith.constant 0 : index
    %202 = vector.load %arg4[%c0_66, %c0_67] : memref<128x16xbf16, #tpu.memory_space<vmem>>, vector<128x16xbf16>
    %cst_68 = arith.constant dense<0.000000e+00> : vector<8x16xf32>
    %203 = tpu.matmul %201, %202, %cst_68 {dimension_numbers = #tpu.dot_dimension_numbers<[1], [0], [0], [1], [0, 0, 1, 1], [], []>} : vector<8x128xbf16>, vector<128x16xbf16>, vector<8x16xf32> -> vector<8x16xf32>
    %c0_69 = arith.constant 0 : index
    %c0_70 = arith.constant 0 : index
    %204 = vector.load %arg5[%c0_69, %c0_70] : memref<1x16xf32, #tpu.memory_space<vmem>>, vector<1x16xf32>
    %205 = vector.broadcast %204 : vector<1x16xf32> to vector<8x16xf32>
    %206 = arith.addf %203, %205 : vector<8x16xf32>
    %c0_71 = arith.constant 0 : index
    %c0_72 = arith.constant 0 : index
    %207 = vector.load %arg6[%c0_71, %c0_72] : memref<8x16xf32, #tpu.memory_space<vmem>>, vector<8x16xf32>
    tpu.vector_store %arg6[%c0_71, %c0_72], %206 {strides = array<i32>} : memref<8x16xf32, #tpu.memory_space<vmem>>, vector<8x16xf32>,
    return
  }
}

</mosaic_0001>

<llo_original>
// kernel: lstm_forward.1
$region0: #{lstm_forward.1}
  #allocation0 [shape = 'u32[]', space=smem, size = 0x4, offset = 0x4, fixed_abs, tag = 'smem constant byte address 0x4 - core index']
  #allocation1 [shape = 'u32[72,128]{1,0:T(1,128)}', space=vmem, size = 0x9000, scoped, tag = 'internal scratch']
  #allocation2 [shape = 'f32[8,128]{1,0:T(8,128)}', space=vmem, size = 0x1000, scoped, tag = 'scratch operand']
  %s0 = inlined_call_operand.vmem [shape: f32[8,16], index: 0, kind: input, shape index: {}]
  %s1 = inlined_call_operand.vmem [shape: bf16[16,512], index: 1, kind: input, shape index: {}]
  %s2 = inlined_call_operand.vmem [shape: f32[1,512], index: 2, kind: input, shape index: {}]
  %s3 = inlined_call_operand.hbm [shape: bf16[128,512], index: 3, kind: input, shape index: {}]
  %s4 = inlined_call_operand.vmem [shape: bf16[128,16], index: 4, kind: input, shape index: {}]
  %s5 = inlined_call_operand.vmem [shape: f32[1,16], index: 5, kind: input, shape index: {}]
  %s6 = inlined_call_operand.hbm [shape: f32[8,16], index: 6, kind: output, shape index: {}]
  %s7 = sld [smem:[#allocation0]]
  $region38: #{lstm_forward.1} parent=0
    _
  %s9 = ssub.s32 1, %s7
  %s10 = scalar_select 0, %s9, %s7
  $region1: #{lstm_forward.1} parent=0
    #allocation3 [shape = 'u8[131072]{0}', space=vmem, size = 0x20000, scoped, tag = 'input window, operand 3, single buffered']
    #allocation4 [shape = 's32[1]{0}', space=sflag, size = 0x4, scoped, tag = 'scoped memory for lstm_forward.1']
    #allocation5 [shape = 's32[1]{0}', space=sflag, size = 0x4, scoped, tag = 'scoped memory for lstm_forward.1']
    #allocation6 [shape = 'u8[4096]{0}', space=vmem, size = 0x1000, scoped, tag = 'output window, operand 0, single buffered']
    %11 = vsyncpa [#allocation4], 0
    %12 = vsyncpa [#allocation5], 0
    // Predicated region
    $region2: #{lstm_forward.1} parent=1 // pred_check
      _
    $region3: #{lstm_forward.1} parent=1 // pred_check_branch
      %14 = sbr.rel (0) target = $region5
    $region4: #{lstm_forward.1} parent=1 // pred_region
      _
    $region5: #{lstm_forward.1} parent=1 // pred_fallthru
      _
    // Predicated region
    $region6: #{lstm_forward.1} parent=1 // pred_check
      _
    $region7: #{lstm_forward.1} parent=1 // pred_check_branch
      %16 = sbr.rel (0) target = $region9
    $region8: #{lstm_forward.1} parent=1 // pred_region
      _
    $region9: #{lstm_forward.1} parent=1 // pred_fallthru
      _
    // Predicated region
    $region10: #{lstm_forward.1} parent=1 // pred_check
      _
    $region11: #{lstm_forward.1} parent=1 // pred_check_branch
      %18 = sbr.rel (0) target = $region13
    $region12: #{lstm_forward.1} parent=1 // pred_region
      _
    $region13: #{lstm_forward.1} parent=1 // pred_fallthru
      _
    // Predicated region
    $region14: #{lstm_forward.1} parent=1 // pred_check
      _
    $region15: #{lstm_forward.1} parent=1 // pred_check_branch
      %20 = sbr.rel (0) target = $region17
    $region16: #{lstm_forward.1} parent=1 // pred_region
      %22 = vsyncadd [#allocation4], 0
      %s23 = sshll.u32 %s3, 4
      %s24 = int_to_ptr.hbm [resolvable:$true] %s23
      %s25 = sshll.u32 [#allocation3], 4
      %s26 = int_to_ptr.vmem [resolvable:$true] %s25
      %31 = dma.hbm_to_vmem [thread:$0]  %s24, 4096, %s26, [#allocation4], 256, 256, 16
    $region17: #{lstm_forward.1} parent=1 // pred_fallthru
      _
    // Predicated region
    $region18: #{lstm_forward.1} parent=1 // pred_check
      _
    $region19: #{lstm_forward.1} parent=1 // pred_check_branch
      %33 = sbr.rel (0) target = $region21
    $region20: #{lstm_forward.1} parent=1 // pred_region
      _
    $region21: #{lstm_forward.1} parent=1 // pred_fallthru
      _
    // Predicated region
    $region22: #{lstm_forward.1} parent=1 // pred_check
      _
    $region23: #{lstm_forward.1} parent=1 // pred_check_branch
      %35 = sbr.rel (0) target = $region25
    $region24: #{lstm_forward.1} parent=1 // pred_region
      _
    $region25: #{lstm_forward.1} parent=1 // pred_fallthru
      _
    // Predicated region
    $region26: #{lstm_forward.1} parent=1 // pred_check
      _
    $region27: #{lstm_forward.1} parent=1 // pred_check_branch
      %37 = sbr.rel (0) target = $region29
    $region28: #{lstm_forward.1} parent=1 // pred_region
      %39 = dma.done [#allocation4], 4096
    $region29: #{lstm_forward.1} parent=1 // pred_fallthru
      _
    %v41 = vld [vmem:[%s0] sm:$0xff]
    %v42 = vpack.c.bf16 %v41, %v41
    %v43 = vld [vmem:[%s1] sm:$0xff]
    %v44 = vld [vmem:[%s1 + $0x8] sm:$0xff]
    %v45 = vld [vmem:[%s1 + $0x10] sm:$0xff]
    %v46 = vld [vmem:[%s1 + $0x18] sm:$0xff]
    %v47 = vld [vmem:[%s2] sm:$0xf]
    %v49 = vperm.slane %v47, 0
    %v50 = vperm.slane %v47, 1
    %v51 = vperm.slane %v47, 2
    %v52 = vperm.slane %v47, 3
    %v61 = vunpack.c.l.b16 %v43
    %v62 = vunpack.c.h.b16 %v43
    %v63 = vunpack.c.l.b16 %v44
    %v64 = vunpack.c.h.b16 %v44
    %v65 = vunpack.c.l.b16 %v45
    %v66 = vunpack.c.h.b16 %v45
    %v67 = vunpack.c.l.b16 %v46
    %v68 = vunpack.c.h.b16 %v46
    %v69 = vpack.c.b16 %v65, %v61
    %v70 = vpack.c.b16 %v66, %v62
    %v71 = vpack.c.b16 %v67, %v63
    %v72 = vpack.c.b16 %v68, %v64
    %vm77 = vcmask 130048
    %v79 = vsel %vm77, %v42, 0
    %81 = vmatpush.bf16.msra.mxu0 0
    %82 = vmatpush.bf16.msra.mxu0 0
    %83 = vmatpush.bf16.msra.mxu0 0
    %84 = vmatpush.bf16.msra.mxu0 0
    %85 = vmatpush.bf16.msra.mxu0 0
    %86 = vmatpush.bf16.msra.mxu0 0
    %87 = vmatpush.bf16.msra.mxu0 0
    %88 = vmatpush.bf16.msra.mxu0 %v69
    %89 = vmatmul.bf16.gmra.mxu0 %v79
    %v90 = vpop.f32.mrf.mxu0
    %v91 = vadd.f32 %v49, %v90
    %v92 = vpop.f32.mrf.mxu0
    %93 = vdwg.mxu0
    %94 = vmatpush.bf16.msra.mxu0 0
    %95 = vmatpush.bf16.msra.mxu0 0
    %96 = vmatpush.bf16.msra.mxu0 0
    %97 = vmatpush.bf16.msra.mxu0 0
    %98 = vmatpush.bf16.msra.mxu0 0
    %99 = vmatpush.bf16.msra.mxu0 0
    %100 = vmatpush.bf16.msra.mxu0 0
    %101 = vmatpush.bf16.msra.mxu0 %v70
    %102 = vmatmul.bf16.gmra.mxu0 %v79
    %v103 = vpop.f32.mrf.mxu0
    %v104 = vadd.f32 %v50, %v103
    %v105 = vpop.f32.mrf.mxu0
    %106 = vdwg.mxu0
    %107 = vmatpush.bf16.msra.mxu0 0
    %108 = vmatpush.bf16.msra.mxu0 0
    %109 = vmatpush.bf16.msra.mxu0 0
    %110 = vmatpush.bf16.msra.mxu0 0
    %111 = vmatpush.bf16.msra.mxu0 0
    %112 = vmatpush.bf16.msra.mxu0 0
    %113 = vmatpush.bf16.msra.mxu0 0
    %114 = vmatpush.bf16.msra.mxu0 %v71
    %115 = vmatmul.bf16.gmra.mxu0 %v79
    %v116 = vpop.f32.mrf.mxu0
    %v117 = vadd.f32 %v51, %v116
    %v118 = vpop.f32.mrf.mxu0
    %119 = vdwg.mxu0
    %120 = vmatpush.bf16.msra.mxu0 0
    %121 = vmatpush.bf16.msra.mxu0 0
    %122 = vmatpush.bf16.msra.mxu0 0
    %123 = vmatpush.bf16.msra.mxu0 0
    %124 = vmatpush.bf16.msra.mxu0 0
    %125 = vmatpush.bf16.msra.mxu0 0
    %126 = vmatpush.bf16.msra.mxu0 0
    %127 = vmatpush.bf16.msra.mxu0 %v72
    %128 = vmatmul.bf16.gmra.mxu0 %v79
    %v129 = vpop.f32.mrf.mxu0
    %v130 = vadd.f32 %v52, %v129
    %v131 = vpop.f32.mrf.mxu0
    %132 = vdwg.mxu0
    %v133 = vld [vmem:[#allocation3] sm:$0xff]
    %v134 = vld [vmem:[#allocation3 + $0x8] sm:$0xff]
    %v135 = vld [vmem:[#allocation3 + $0x10] sm:$0xff]
    %v136 = vld [vmem:[#allocation3 + $0x18] sm:$0xff]
    %v137 = vld [vmem:[#allocation3 + $0x20] sm:$0xff]
    %v138 = vld [vmem:[#allocation3 + $0x28] sm:$0xff]
    %v139 = vld [vmem:[#allocation3 + $0x30] sm:$0xff]
    %v140 = vld [vmem:[#allocation3 + $0x38] sm:$0xff]
    %v141 = vld [vmem:[#allocation3 + $0x40] sm:$0xff]
    %v142 = vld [vmem:[#allocation3 + $0x48] sm:$0xff]
    %v143 = vld [vmem:[#allocation3 + $0x50] sm:$0xff]
    %v144 = vld [vmem:[#allocation3 + $0x58] sm:$0xff]
    %v145 = vld [vmem:[#allocation3 + $0x60] sm:$0xff]
    %v146 = vld [vmem:[#allocation3 + $0x68] sm:$0xff]
    %v147 = vld [vmem:[#allocation3 + $0x70] sm:$0xff]
    %v148 = vld [vmem:[#allocation3 + $0x78] sm:$0xff]
    %v149 = vld [vmem:[#allocation3 + $0x80] sm:$0xff]
    %v150 = vld [vmem:[#allocation3 + $0x88] sm:$0xff]
    %v151 = vld [vmem:[#allocation3 + $0x90] sm:$0xff]
    %v152 = vld [vmem:[#allocation3 + $0x98] sm:$0xff]
    %v153 = vld [vmem:[#allocation3 + $0xa0] sm:$0xff]
    %v154 = vld [vmem:[#allocation3 + $0xa8] sm:$0xff]
    %v155 = vld [vmem:[#allocation3 + $0xb0] sm:$0xff]
    %v156 = vld [vmem:[#allocation3 + $0xb8] sm:$0xff]
    %v157 = vld [vmem:[#allocation3 + $0xc0] sm:$0xff]
    %v158 = vld [vmem:[#allocation3 + $0xc8] sm:$0xff]
    %v159 = vld [vmem:[#allocation3 + $0xd0] sm:$0xff]
    %v160 = vld [vmem:[#allocation3 + $0xd8] sm:$0xff]
    %v161 = vld [vmem:[#allocation3 + $0xe0] sm:$0xff]
    %v162 = vld [vmem:[#allocation3 + $0xe8] sm:$0xff]
    %v163 = vld [vmem:[#allocation3 + $0xf0] sm:$0xff]
    %v164 = vld [vmem:[#allocation3 + $0xf8] sm:$0xff]
    %v197 = vunpack.c.l.b16 %v133
    %v198 = vunpack.c.h.b16 %v133
    %v199 = vunpack.c.l.b16 %v134
    %v200 = vunpack.c.h.b16 %v134
    %v201 = vunpack.c.l.b16 %v135
    %v202 = vunpack.c.h.b16 %v135
    %v203 = vunpack.c.l.b16 %v136
    %v204 = vunpack.c.h.b16 %v136
    %v205 = vunpack.c.l.b16 %v137
    %v206 = vunpack.c.h.b16 %v137
    %v207 = vunpack.c.l.b16 %v138
    %v208 = vunpack.c.h.b16 %v138
    %v209 = vunpack.c.l.b16 %v139
    %v210 = vunpack.c.h.b16 %v139
    %v211 = vunpack.c.l.b16 %v140
    %v212 = vunpack.c.h.b16 %v140
    %v213 = vunpack.c.l.b16 %v141
    %v214 = vunpack.c.h.b16 %v141
    %v215 = vunpack.c.l.b16 %v142
    %v216 = vunpack.c.h.b16 %v142
    %v217 = vunpack.c.l.b16 %v143
    %v218 = vunpack.c.h.b16 %v143
    %v219 = vunpack.c.l.b16 %v144
    %v220 = vunpack.c.h.b16 %v144
    %v221 = vunpack.c.l.b16 %v145
    %v222 = vunpack.c.h.b16 %v145
    %v223 = vunpack.c.l.b16 %v146
    %v224 = vunpack.c.h.b16 %v146
    %v225 = vunpack.c.l.b16 %v147
    %v226 = vunpack.c.h.b16 %v147
    %v227 = vunpack.c.l.b16 %v148
    %v228 = vunpack.c.h.b16 %v148
    %v229 = vunpack.c.l.b16 %v149
    %v230 = vunpack.c.h.b16 %v149
    %v231 = vunpack.c.l.b16 %v150
    %v232 = vunpack.c.h.b16 %v150
    %v233 = vunpack.c.l.b16 %v151
    %v234 = vunpack.c.h.b16 %v151
    %v235 = vunpack.c.l.b16 %v152
    %v236 = vunpack.c.h.b16 %v152
    %v237 = vunpack.c.l.b16 %v153
    %v238 = vunpack.c.h.b16 %v153
    %v239 = vunpack.c.l.b16 %v154
    %v240 = vunpack.c.h.b16 %v154
    %v241 = vunpack.c.l.b16 %v155
    %v242 = vunpack.c.h.b16 %v155
    %v243 = vunpack.c.l.b16 %v156
    %v244 = vunpack.c.h.b16 %v156
    %v245 = vunpack.c.l.b16 %v157
    %v246 = vunpack.c.h.b16 %v157
    %v247 = vunpack.c.l.b16 %v158
    %v248 = vunpack.c.h.b16 %v158
    %v249 = vunpack.c.l.b16 %v159
    %v250 = vunpack.c.h.b16 %v159
    %v251 = vunpack.c.l.b16 %v160
    %v252 = vunpack.c.h.b16 %v160
    %v253 = vunpack.c.l.b16 %v161
    %v254 = vunpack.c.h.b16 %v161
    %v255 = vunpack.c.l.b16 %v162
    %v256 = vunpack.c.h.b16 %v162
    %v257 = vunpack.c.l.b16 %v163
    %v258 = vunpack.c.h.b16 %v163
    %v259 = vunpack.c.l.b16 %v164
    %v260 = vunpack.c.h.b16 %v164
    %v261 = vpack.c.b16 %v201, %v197
    %v262 = vpack.c.b16 %v202, %v198
    %v263 = vpack.c.b16 %v203, %v199
    %v264 = vpack.c.b16 %v204, %v200
    %v265 = vpack.c.b16 %v209, %v205
    %v266 = vpack.c.b16 %v210, %v206
    %v267 = vpack.c.b16 %v211, %v207
    %v268 = vpack.c.b16 %v212, %v208
    %v269 = vpack.c.b16 %v217, %v213
    %v270 = vpack.c.b16 %v218, %v214
    %v271 = vpack.c.b16 %v219, %v215
    %v272 = vpack.c.b16 %v220, %v216
    %v273 = vpack.c.b16 %v225, %v221
    %v274 = vpack.c.b16 %v226, %v222
    %v275 = vpack.c.b16 %v227, %v223
    %v276 = vpack.c.b16 %v228, %v224
    %v277 = vpack.c.b16 %v233, %v229
    %v278 = vpack.c.b16 %v234, %v230
    %v279 = vpack.c.b16 %v235, %v231
    %v280 = vpack.c.b16 %v236, %v232
    %v281 = vpack.c.b16 %v241, %v237
    %v282 = vpack.c.b16 %v242, %v238
    %v283 = vpack.c.b16 %v243, %v239
    %v284 = vpack.c.b16 %v244, %v240
    %v285 = vpack.c.b16 %v249, %v245
    %v286 = vpack.c.b16 %v250, %v246
    %v287 = vpack.c.b16 %v251, %v247
    %v288 = vpack.c.b16 %v252, %v248
    %v289 = vpack.c.b16 %v257, %v253
    %v290 = vpack.c.b16 %v258, %v254
    %v291 = vpack.c.b16 %v259, %v255
    %v292 = vpack.c.b16 %v260, %v256
    %325 = vmatpush.bf16.msra.mxu0 %v289
    %326 = vmatpush.bf16.msra.mxu0 %v285
    %327 = vmatpush.bf16.msra.mxu0 %v281
    %328 = vmatpush.bf16.msra.mxu0 %v277
    %329 = vmatpush.bf16.msra.mxu0 %v273
    %330 = vmatpush.bf16.msra.mxu0 %v269
    %331 = vmatpush.bf16.msra.mxu0 %v265
    %332 = vmatpush.bf16.msra.mxu0 %v261
    %333 = vmatmul.bf16.gmra.mxu0 0
    %v334 = vpop.f32.mrf.mxu0
    %v335 = vadd.f32 0.0, %v334
    %v336 = vpop.f32.mrf.mxu0
    %337 = vdwg.mxu0
    %338 = vmatpush.bf16.msra.mxu0 %v290
    %339 = vmatpush.bf16.msra.mxu0 %v286
    %340 = vmatpush.bf16.msra.mxu0 %v282
    %341 = vmatpush.bf16.msra.mxu0 %v278
    %342 = vmatpush.bf16.msra.mxu0 %v274
    %343 = vmatpush.bf16.msra.mxu0 %v270
    %344 = vmatpush.bf16.msra.mxu0 %v266
    %345 = vmatpush.bf16.msra.mxu0 %v262
    %346 = vmatmul.bf16.gmra.mxu0 0
    %v347 = vpop.f32.mrf.mxu0
    %v348 = vadd.f32 0.0, %v347
    %v349 = vpop.f32.mrf.mxu0
    %350 = vdwg.mxu0
    %351 = vmatpush.bf16.msra.mxu0 %v291
    %352 = vmatpush.bf16.msra.mxu0 %v287
    %353 = vmatpush.bf16.msra.mxu0 %v283
    %354 = vmatpush.bf16.msra.mxu0 %v279
    %355 = vmatpush.bf16.msra.mxu0 %v275
    %356 = vmatpush.bf16.msra.mxu0 %v271
    %357 = vmatpush.bf16.msra.mxu0 %v267
    %358 = vmatpush.bf16.msra.mxu0 %v263
    %359 = vmatmul.bf16.gmra.mxu0 0
    %v360 = vpop.f32.mrf.mxu0
    %v361 = vadd.f32 0.0, %v360
    %v362 = vpop.f32.mrf.mxu0
    %363 = vdwg.mxu0
    %364 = vmatpush.bf16.msra.mxu0 %v292
    %365 = vmatpush.bf16.msra.mxu0 %v288
    %366 = vmatpush.bf16.msra.mxu0 %v284
    %367 = vmatpush.bf16.msra.mxu0 %v280
    %368 = vmatpush.bf16.msra.mxu0 %v276
    %369 = vmatpush.bf16.msra.mxu0 %v272
    %370 = vmatpush.bf16.msra.mxu0 %v268
    %371 = vmatpush.bf16.msra.mxu0 %v264
    %372 = vmatmul.bf16.gmra.mxu0 0
    %v373 = vpop.f32.mrf.mxu0
    %v374 = vadd.f32 0.0, %v373
    %v375 = vpop.f32.mrf.mxu0
    %376 = vdwg.mxu0
    %v377 = vadd.f32 %v91, %v335
    %v378 = vadd.f32 %v104, %v348
    %v379 = vadd.f32 %v117, %v361
    %v380 = vadd.f32 %v130, %v374
    %v381 = vmul.f32 %v377, 0.5
    %v382 = vmul.f32 %v378, 0.5
    %v383 = vmul.f32 %v379, 0.5
    %v384 = vtanh.pop %v381
    %v385 = vtanh.pop %v382
    %v386 = vtanh.pop %v383
    %v387 = vmul.f32 %v384, 0.5
    %v388 = vmul.f32 %v385, 0.5
    %v389 = vmul.f32 %v386, 0.5
    %v390 = vadd.f32 %v387, 0.5
    %v391 = vadd.f32 %v388, 0.5
    %v392 = vadd.f32 %v389, 0.5
    %v393 = vtanh.pop %v380
    %v394 = vmul.f32 %v391, 0.0
    %v395 = vmul.f32 %v390, %v393
    %v396 = vadd.f32 %v394, %v395
    %v397 = vtanh.pop %v396
    %v398 = vmul.f32 %v392, %v397
    %v399 = vpack.c.bf16 %v398, %v398
    %400 = vst [vmem:[#allocation2] sm:$0x1] %v398
    %v401 = vld [vmem:[#allocation3] sm:$0xff]
    %v402 = vld [vmem:[#allocation3 + $0x8] sm:$0xff]
    %v403 = vld [vmem:[#allocation3 + $0x10] sm:$0xff]
    %v404 = vld [vmem:[#allocation3 + $0x18] sm:$0xff]
    %v405 = vld [vmem:[#allocation3 + $0x20] sm:$0xff]
    %v406 = vld [vmem:[#allocation3 + $0x28] sm:$0xff]
    %v407 = vld [vmem:[#allocation3 + $0x30] sm:$0xff]
    %v408 = vld [vmem:[#allocation3 + $0x38] sm:$0xff]
    %v409 = vld [vmem:[#allocation3 + $0x40] sm:$0xff]
    %v410 = vld [vmem:[#allocation3 + $0x48] sm:$0xff]
    %v411 = vld [vmem:[#allocation3 + $0x50] sm:$0xff]
    %v412 = vld [vmem:[#allocation3 + $0x58] sm:$0xff]
    %v413 = vld [vmem:[#allocation3 + $0x60] sm:$0xff]
    %v414 = vld [vmem:[#allocation3 + $0x68] sm:$0xff]
    %v415 = vld [vmem:[#allocation3 + $0x70] sm:$0xff]
    %v416 = vld [vmem:[#allocation3 + $0x78] sm:$0xff]
    %v417 = vld [vmem:[#allocation3 + $0x80] sm:$0xff]
    %v418 = vld [vmem:[#allocation3 + $0x88] sm:$0xff]
    %v419 = vld [vmem:[#allocation3 + $0x90] sm:$0xff]
    %v420 = vld [vmem:[#allocation3 + $0x98] sm:$0xff]
    %v421 = vld [vmem:[#allocation3 + $0xa0] sm:$0xff]
    %v422 = vld [vmem:[#allocation3 + $0xa8] sm:$0xff]
    %v423 = vld [vmem:[#allocation3 + $0xb0] sm:$0xff]
    %v424 = vld [vmem:[#allocation3 + $0xb8] sm:$0xff]
    %v425 = vld [vmem:[#allocation3 + $0xc0] sm:$0xff]
    %v426 = vld [vmem:[#allocation3 + $0xc8] sm:$0xff]
    %v427 = vld [vmem:[#allocation3 + $0xd0] sm:$0xff]
    %v428 = vld [vmem:[#allocation3 + $0xd8] sm:$0xff]
    %v429 = vld [vmem:[#allocation3 + $0xe0] sm:$0xff]
    %v430 = vld [vmem:[#allocation3 + $0xe8] sm:$0xff]
    %v431 = vld [vmem:[#allocation3 + $0xf0] sm:$0xff]
    %v432 = vld [vmem:[#allocation3 + $0xf8] sm:$0xff]
    %v465 = vunpack.c.l.b16 %v401
    %v466 = vunpack.c.h.b16 %v401
    %v467 = vunpack.c.l.b16 %v402
    %v468 = vunpack.c.h.b16 %v402
    %v469 = vunpack.c.l.b16 %v403
    %v470 = vunpack.c.h.b16 %v403
    %v471 = vunpack.c.l.b16 %v404
    %v472 = vunpack.c.h.b16 %v404
    %v473 = vunpack.c.l.b16 %v405
    %v474 = vunpack.c.h.b16 %v405
    %v475 = vunpack.c.l.b16 %v406
    %v476 = vunpack.c.h.b16 %v406
    %v477 = vunpack.c.l.b16 %v407
    %v478 = vunpack.c.h.b16 %v407
    %v479 = vunpack.c.l.b16 %v408
    %v480 = vunpack.c.h.b16 %v408
    %v481 = vunpack.c.l.b16 %v409
    %v482 = vunpack.c.h.b16 %v409
    %v483 = vunpack.c.l.b16 %v410
    %v484 = vunpack.c.h.b16 %v410
    %v485 = vunpack.c.l.b16 %v411
    %v486 = vunpack.c.h.b16 %v411
    %v487 = vunpack.c.l.b16 %v412
    %v488 = vunpack.c.h.b16 %v412
    %v489 = vunpack.c.l.b16 %v413
    %v490 = vunpack.c.h.b16 %v413
    %v491 = vunpack.c.l.b16 %v414
    %v492 = vunpack.c.h.b16 %v414
    %v493 = vunpack.c.l.b16 %v415
    %v494 = vunpack.c.h.b16 %v415
    %v495 = vunpack.c.l.b16 %v416
    %v496 = vunpack.c.h.b16 %v416
    %v497 = vunpack.c.l.b16 %v417
    %v498 = vunpack.c.h.b16 %v417
    %v499 = vunpack.c.l.b16 %v418
    %v500 = vunpack.c.h.b16 %v418
    %v501 = vunpack.c.l.b16 %v419
    %v502 = vunpack.c.h.b16 %v419
    %v503 = vunpack.c.l.b16 %v420
    %v504 = vunpack.c.h.b16 %v420
    %v505 = vunpack.c.l.b16 %v421
    %v506 = vunpack.c.h.b16 %v421
    %v507 = vunpack.c.l.b16 %v422
    %v508 = vunpack.c.h.b16 %v422
    %v509 = vunpack.c.l.b16 %v423
    %v510 = vunpack.c.h.b16 %v423
    %v511 = vunpack.c.l.b16 %v424
    %v512 = vunpack.c.h.b16 %v424
    %v513 = vunpack.c.l.b16 %v425
    %v514 = vunpack.c.h.b16 %v425
    %v515 = vunpack.c.l.b16 %v426
    %v516 = vunpack.c.h.b16 %v426
    %v517 = vunpack.c.l.b16 %v427
    %v518 = vunpack.c.h.b16 %v427
    %v519 = vunpack.c.l.b16 %v428
    %v520 = vunpack.c.h.b16 %v428
    %v521 = vunpack.c.l.b16 %v429
    %v522 = vunpack.c.h.b16 %v429
    %v523 = vunpack.c.l.b16 %v430
    %v524 = vunpack.c.h.b16 %v430
    %v525 = vunpack.c.l.b16 %v431
    %v526 = vunpack.c.h.b16 %v431
    %v527 = vunpack.c.l.b16 %v432
    %v528 = vunpack.c.h.b16 %v432
    %v529 = vpack.c.b16 %v469, %v465
    %v530 = vpack.c.b16 %v470, %v466
    %v531 = vpack.c.b16 %v471, %v467
    %v532 = vpack.c.b16 %v472, %v468
    %v533 = vpack.c.b16 %v477, %v473
    %v534 = vpack.c.b16 %v478, %v474
    %v535 = vpack.c.b16 %v479, %v475
    %v536 = vpack.c.b16 %v480, %v476
    %v537 = vpack.c.b16 %v485, %v481
    %v538 = vpack.c.b16 %v486, %v482
    %v539 = vpack.c.b16 %v487, %v483
    %v540 = vpack.c.b16 %v488, %v484
    %v541 = vpack.c.b16 %v493, %v489
    %v542 = vpack.c.b16 %v494, %v490
    %v543 = vpack.c.b16 %v495, %v491
    %v544 = vpack.c.b16 %v496, %v492
    %v545 = vpack.c.b16 %v501, %v497
    %v546 = vpack.c.b16 %v502, %v498
    %v547 = vpack.c.b16 %v503, %v499
    %v548 = vpack.c.b16 %v504, %v500
    %v549 = vpack.c.b16 %v509, %v505
    %v550 = vpack.c.b16 %v510, %v506
    %v551 = vpack.c.b16 %v511, %v507
    %v552 = vpack.c.b16 %v512, %v508
    %v553 = vpack.c.b16 %v517, %v513
    %v554 = vpack.c.b16 %v518, %v514
    %v555 = vpack.c.b16 %v519, %v515
    %v556 = vpack.c.b16 %v520, %v516
    %v557 = vpack.c.b16 %v525, %v521
    %v558 = vpack.c.b16 %v526, %v522
    %v559 = vpack.c.b16 %v527, %v523
    %v560 = vpack.c.b16 %v528, %v524
    %593 = vmatpush.bf16.msra.mxu0 %v557
    %594 = vmatpush.bf16.msra.mxu0 %v553
    %595 = vmatpush.bf16.msra.mxu0 %v549
    %596 = vmatpush.bf16.msra.mxu0 %v545
    %597 = vmatpush.bf16.msra.mxu0 %v541
    %598 = vmatpush.bf16.msra.mxu0 %v537
    %599 = vmatpush.bf16.msra.mxu0 %v533
    %600 = vmatpush.bf16.msra.mxu0 %v529
    %601 = vmatmul.bf16.gmra.mxu0 %v399
    %v602 = vpop.f32.mrf.mxu0
    %v603 = vadd.f32 0.0, %v602
    %v604 = vpop.f32.mrf.mxu0
    %605 = vdwg.mxu0
    %606 = vmatpush.bf16.msra.mxu0 %v558
    %607 = vmatpush.bf16.msra.mxu0 %v554
    %608 = vmatpush.bf16.msra.mxu0 %v550
    %609 = vmatpush.bf16.msra.mxu0 %v546
    %610 = vmatpush.bf16.msra.mxu0 %v542
    %611 = vmatpush.bf16.msra.mxu0 %v538
    %612 = vmatpush.bf16.msra.mxu0 %v534
    %613 = vmatpush.bf16.msra.mxu0 %v530
    %614 = vmatmul.bf16.gmra.mxu0 %v399
    %v615 = vpop.f32.mrf.mxu0
    %v616 = vadd.f32 0.0, %v615
    %v617 = vpop.f32.mrf.mxu0
    %618 = vdwg.mxu0
    %619 = vmatpush.bf16.msra.mxu0 %v559
    %620 = vmatpush.bf16.msra.mxu0 %v555
    %621 = vmatpush.bf16.msra.mxu0 %v551
    %622 = vmatpush.bf16.msra.mxu0 %v547
    %623 = vmatpush.bf16.msra.mxu0 %v543
    %624 = vmatpush.bf16.msra.mxu0 %v539
    %625 = vmatpush.bf16.msra.mxu0 %v535
    %626 = vmatpush.bf16.msra.mxu0 %v531
    %627 = vmatmul.bf16.gmra.mxu0 %v399
    %v628 = vpop.f32.mrf.mxu0
    %v629 = vadd.f32 0.0, %v628
    %v630 = vpop.f32.mrf.mxu0
    %631 = vdwg.mxu0
    %632 = vmatpush.bf16.msra.mxu0 %v560
    %633 = vmatpush.bf16.msra.mxu0 %v556
    %634 = vmatpush.bf16.msra.mxu0 %v552
    %635 = vmatpush.bf16.msra.mxu0 %v548
    %636 = vmatpush.bf16.msra.mxu0 %v544
    %637 = vmatpush.bf16.msra.mxu0 %v540
    %638 = vmatpush.bf16.msra.mxu0 %v536
    %639 = vmatpush.bf16.msra.mxu0 %v532
    %640 = vmatmul.bf16.gmra.mxu0 %v399
    %v641 = vpop.f32.mrf.mxu0
    %v642 = vadd.f32 0.0, %v641
    %v643 = vpop.f32.mrf.mxu0
    %644 = vdwg.mxu0
    %v649 = vrot.slane %v603, 7
    %v650 = vrot.slane %v616, 7
    %v651 = vrot.slane %v629, 7
    %v652 = vrot.slane %v642, 7
    %v657 = vadd.f32 %v91, %v649
    %v658 = vadd.f32 %v104, %v650
    %v659 = vadd.f32 %v117, %v651
    %v660 = vadd.f32 %v130, %v652
    %v661 = vmul.f32 %v657, 0.5
    %v662 = vmul.f32 %v658, 0.5
    %v663 = vmul.f32 %v659, 0.5
    %v664 = vtanh.pop %v661
    %v665 = vtanh.pop %v662
    %v666 = vtanh.pop %v663
    %v667 = vmul.f32 %v664, 0.5
    %v668 = vmul.f32 %v665, 0.5
    %v669 = vmul.f32 %v666, 0.5
    %v670 = vadd.f32 %v667, 0.5
    %v671 = vadd.f32 %v668, 0.5
    %v672 = vadd.f32 %v669, 0.5
    %v673 = vtanh.pop %v660
    %v675 = vrot.slane %v396, 7
    %v677 = vmul.f32 %v671, %v675
    %v678 = vmul.f32 %v670, %v673
    %v679 = vadd.f32 %v677, %v678
    %v680 = vtanh.pop %v679
    %v681 = vmul.f32 %v672, %v680
    %v682 = vpack.c.bf16 %v681, %v681
    %683 = vst [vmem:[#allocation2] sm:$0x2] %v681
    %v684 = vld [vmem:[#allocation3] sm:$0xff]
    %v685 = vld [vmem:[#allocation3 + $0x8] sm:$0xff]
    %v686 = vld [vmem:[#allocation3 + $0x10] sm:$0xff]
    %v687 = vld [vmem:[#allocation3 + $0x18] sm:$0xff]
    %v688 = vld [vmem:[#allocation3 + $0x20] sm:$0xff]
    %v689 = vld [vmem:[#allocation3 + $0x28] sm:$0xff]
    %v690 = vld [vmem:[#allocation3 + $0x30] sm:$0xff]
    %v691 = vld [vmem:[#allocation3 + $0x38] sm:$0xff]
    %v692 = vld [vmem:[#allocation3 + $0x40] sm:$0xff]
    %v693 = vld [vmem:[#allocation3 + $0x48] sm:$0xff]
    %v694 = vld [vmem:[#allocation3 + $0x50] sm:$0xff]
    %v695 = vld [vmem:[#allocation3 + $0x58] sm:$0xff]
    %v696 = vld [vmem:[#allocation3 + $0x60] sm:$0xff]
    %v697 = vld [vmem:[#allocation3 + $0x68] sm:$0xff]
    %v698 = vld [vmem:[#allocation3 + $0x70] sm:$0xff]
    %v699 = vld [vmem:[#allocation3 + $0x78] sm:$0xff]
    %v700 = vld [vmem:[#allocation3 + $0x80] sm:$0xff]
    %v701 = vld [vmem:[#allocation3 + $0x88] sm:$0xff]
    %v702 = vld [vmem:[#allocation3 + $0x90] sm:$0xff]
    %v703 = vld [vmem:[#allocation3 + $0x98] sm:$0xff]
    %v704 = vld [vmem:[#allocation3 + $0xa0] sm:$0xff]
    %v705 = vld [vmem:[#allocation3 + $0xa8] sm:$0xff]
    %v706 = vld [vmem:[#allocation3 + $0xb0] sm:$0xff]
    %v707 = vld [vmem:[#allocation3 + $0xb8] sm:$0xff]
    %v708 = vld [vmem:[#allocation3 + $0xc0] sm:$0xff]
    %v709 = vld [vmem:[#allocation3 + $0xc8] sm:$0xff]
    %v710 = vld [vmem:[#allocation3 + $0xd0] sm:$0xff]
    %v711 = vld [vmem:[#allocation3 + $0xd8] sm:$0xff]
    %v712 = vld [vmem:[#allocation3 + $0xe0] sm:$0xff]
    %v713 = vld [vmem:[#allocation3 + $0xe8] sm:$0xff]
    %v714 = vld [vmem:[#allocation3 + $0xf0] sm:$0xff]
    %v715 = vld [vmem:[#allocation3 + $0xf8] sm:$0xff]
    %v717 = vshrl.u32 %v682, 16
    %v752 = vunpack.c.l.b16 %v684
    %v753 = vunpack.c.h.b16 %v684
    %v754 = vunpack.c.l.b16 %v685
    %v755 = vunpack.c.h.b16 %v685
    %v756 = vunpack.c.l.b16 %v686
    %v757 = vunpack.c.h.b16 %v686
    %v758 = vunpack.c.l.b16 %v687
    %v759 = vunpack.c.h.b16 %v687
    %v760 = vunpack.c.l.b16 %v688
    %v761 = vunpack.c.h.b16 %v688
    %v762 = vunpack.c.l.b16 %v689
    %v763 = vunpack.c.h.b16 %v689
    %v764 = vunpack.c.l.b16 %v690
    %v765 = vunpack.c.h.b16 %v690
    %v766 = vunpack.c.l.b16 %v691
    %v767 = vunpack.c.h.b16 %v691
    %v768 = vunpack.c.l.b16 %v692
    %v769 = vunpack.c.h.b16 %v692
    %v770 = vunpack.c.l.b16 %v693
    %v771 = vunpack.c.h.b16 %v693
    %v772 = vunpack.c.l.b16 %v694
    %v773 = vunpack.c.h.b16 %v694
    %v774 = vunpack.c.l.b16 %v695
    %v775 = vunpack.c.h.b16 %v695
    %v776 = vunpack.c.l.b16 %v696
    %v777 = vunpack.c.h.b16 %v696
    %v778 = vunpack.c.l.b16 %v697
    %v779 = vunpack.c.h.b16 %v697
    %v780 = vunpack.c.l.b16 %v698
    %v781 = vunpack.c.h.b16 %v698
    %v782 = vunpack.c.l.b16 %v699
    %v783 = vunpack.c.h.b16 %v699
    %v784 = vunpack.c.l.b16 %v700
    %v785 = vunpack.c.h.b16 %v700
    %v786 = vunpack.c.l.b16 %v701
    %v787 = vunpack.c.h.b16 %v701
    %v788 = vunpack.c.l.b16 %v702
    %v789 = vunpack.c.h.b16 %v702
    %v790 = vunpack.c.l.b16 %v703
    %v791 = vunpack.c.h.b16 %v703
    %v792 = vunpack.c.l.b16 %v704
    %v793 = vunpack.c.h.b16 %v704
    %v794 = vunpack.c.l.b16 %v705
    %v795 = vunpack.c.h.b16 %v705
    %v796 = vunpack.c.l.b16 %v706
    %v797 = vunpack.c.h.b16 %v706
    %v798 = vunpack.c.l.b16 %v707
    %v799 = vunpack.c.h.b16 %v707
    %v800 = vunpack.c.l.b16 %v708
    %v801 = vunpack.c.h.b16 %v708
    %v802 = vunpack.c.l.b16 %v709
    %v803 = vunpack.c.h.b16 %v709
    %v804 = vunpack.c.l.b16 %v710
    %v805 = vunpack.c.h.b16 %v710
    %v806 = vunpack.c.l.b16 %v711
    %v807 = vunpack.c.h.b16 %v711
    %v808 = vunpack.c.l.b16 %v712
    %v809 = vunpack.c.h.b16 %v712
    %v810 = vunpack.c.l.b16 %v713
    %v811 = vunpack.c.h.b16 %v713
    %v812 = vunpack.c.l.b16 %v714
    %v813 = vunpack.c.h.b16 %v714
    %v814 = vunpack.c.l.b16 %v715
    %v815 = vunpack.c.h.b16 %v715
    %v816 = vpack.c.b16 %v756, %v752
    %v817 = vpack.c.b16 %v757, %v753
    %v818 = vpack.c.b16 %v758, %v754
    %v819 = vpack.c.b16 %v759, %v755
    %v820 = vpack.c.b16 %v764, %v760
    %v821 = vpack.c.b16 %v765, %v761
    %v822 = vpack.c.b16 %v766, %v762
    %v823 = vpack.c.b16 %v767, %v763
    %v824 = vpack.c.b16 %v772, %v768
    %v825 = vpack.c.b16 %v773, %v769
    %v826 = vpack.c.b16 %v774, %v770
    %v827 = vpack.c.b16 %v775, %v771
    %v828 = vpack.c.b16 %v780, %v776
    %v829 = vpack.c.b16 %v781, %v777
    %v830 = vpack.c.b16 %v782, %v778
    %v831 = vpack.c.b16 %v783, %v779
    %v832 = vpack.c.b16 %v788, %v784
    %v833 = vpack.c.b16 %v789, %v785
    %v834 = vpack.c.b16 %v790, %v786
    %v835 = vpack.c.b16 %v791, %v787
    %v836 = vpack.c.b16 %v796, %v792
    %v837 = vpack.c.b16 %v797, %v793
    %v838 = vpack.c.b16 %v798, %v794
    %v839 = vpack.c.b16 %v799, %v795
    %v840 = vpack.c.b16 %v804, %v800
    %v841 = vpack.c.b16 %v805, %v801
    %v842 = vpack.c.b16 %v806, %v802
    %v843 = vpack.c.b16 %v807, %v803
    %v844 = vpack.c.b16 %v812, %v808
    %v845 = vpack.c.b16 %v813, %v809
    %v846 = vpack.c.b16 %v814, %v810
    %v847 = vpack.c.b16 %v815, %v811
    %880 = vmatpush.bf16.msra.mxu0 %v844
    %881 = vmatpush.bf16.msra.mxu0 %v840
    %882 = vmatpush.bf16.msra.mxu0 %v836
    %883 = vmatpush.bf16.msra.mxu0 %v832
    %884 = vmatpush.bf16.msra.mxu0 %v828
    %885 = vmatpush.bf16.msra.mxu0 %v824
    %886 = vmatpush.bf16.msra.mxu0 %v820
    %887 = vmatpush.bf16.msra.mxu0 %v816
    %888 = vmatmul.bf16.gmra.mxu0 %v717
    %v889 = vpop.f32.mrf.mxu0
    %v890 = vadd.f32 0.0, %v889
    %v891 = vpop.f32.mrf.mxu0
    %892 = vdwg.mxu0
    %893 = vmatpush.bf16.msra.mxu0 %v845
    %894 = vmatpush.bf16.msra.mxu0 %v841
    %895 = vmatpush.bf16.msra.mxu0 %v837
    %896 = vmatpush.bf16.msra.mxu0 %v833
    %897 = vmatpush.bf16.msra.mxu0 %v829
    %898 = vmatpush.bf16.msra.mxu0 %v825
    %899 = vmatpush.bf16.msra.mxu0 %v821
    %900 = vmatpush.bf16.msra.mxu0 %v817
    %901 = vmatmul.bf16.gmra.mxu0 %v717
    %v902 = vpop.f32.mrf.mxu0
    %v903 = vadd.f32 0.0, %v902
    %v904 = vpop.f32.mrf.mxu0
    %905 = vdwg.mxu0
    %906 = vmatpush.bf16.msra.mxu0 %v846
    %907 = vmatpush.bf16.msra.mxu0 %v842
    %908 = vmatpush.bf16.msra.mxu0 %v838
    %909 = vmatpush.bf16.msra.mxu0 %v834
    %910 = vmatpush.bf16.msra.mxu0 %v830
    %911 = vmatpush.bf16.msra.mxu0 %v826
    %912 = vmatpush.bf16.msra.mxu0 %v822
    %913 = vmatpush.bf16.msra.mxu0 %v818
    %914 = vmatmul.bf16.gmra.mxu0 %v717
    %v915 = vpop.f32.mrf.mxu0
    %v916 = vadd.f32 0.0, %v915
    %v917 = vpop.f32.mrf.mxu0
    %918 = vdwg.mxu0
    %919 = vmatpush.bf16.msra.mxu0 %v847
    %920 = vmatpush.bf16.msra.mxu0 %v843
    %921 = vmatpush.bf16.msra.mxu0 %v839
    %922 = vmatpush.bf16.msra.mxu0 %v835
    %923 = vmatpush.bf16.msra.mxu0 %v831
    %924 = vmatpush.bf16.msra.mxu0 %v827
    %925 = vmatpush.bf16.msra.mxu0 %v823
    %926 = vmatpush.bf16.msra.mxu0 %v819
    %927 = vmatmul.bf16.gmra.mxu0 %v717
    %v928 = vpop.f32.mrf.mxu0
    %v929 = vadd.f32 0.0, %v928
    %v930 = vpop.f32.mrf.mxu0
    %931 = vdwg.mxu0
    %v936 = vrot.slane %v890, 6
    %v937 = vrot.slane %v903, 6
    %v938 = vrot.slane %v916, 6
    %v939 = vrot.slane %v929, 6
    %v944 = vadd.f32 %v91, %v936
    %v945 = vadd.f32 %v104, %v937
    %v946 = vadd.f32 %v117, %v938
    %v947 = vadd.f32 %v130, %v939
    %v948 = vmul.f32 %v944, 0.5
    %v949 = vmul.f32 %v945, 0.5
    %v950 = vmul.f32 %v946, 0.5
    %v951 = vtanh.pop %v948
    %v952 = vtanh.pop %v949
    %v953 = vtanh.pop %v950
    %v954 = vmul.f32 %v951, 0.5
    %v955 = vmul.f32 %v952, 0.5
    %v956 = vmul.f32 %v953, 0.5
    %v957 = vadd.f32 %v954, 0.5
    %v958 = vadd.f32 %v955, 0.5
    %v959 = vadd.f32 %v956, 0.5
    %v960 = vtanh.pop %v947
    %v962 = vrot.slane %v679, 7
    %v964 = vmul.f32 %v958, %v962
    %v965 = vmul.f32 %v957, %v960
    %v966 = vadd.f32 %v964, %v965
    %v967 = vtanh.pop %v966
    %v968 = vmul.f32 %v959, %v967
    %v969 = vpack.c.bf16 %v968, %v968
    %970 = vst [vmem:[#allocation2] sm:$0x4] %v968
    %v971 = vld [vmem:[#allocation3] sm:$0xff]
    %v972 = vld [vmem:[#allocation3 + $0x8] sm:$0xff]
    %v973 = vld [vmem:[#allocation3 + $0x10] sm:$0xff]
    %v974 = vld [vmem:[#allocation3 + $0x18] sm:$0xff]
    %v975 = vld [vmem:[#allocation3 + $0x20] sm:$0xff]
    %v976 = vld [vmem:[#allocation3 + $0x28] sm:$0xff]
    %v977 = vld [vmem:[#allocation3 + $0x30] sm:$0xff]
    %v978 = vld [vmem:[#allocation3 + $0x38] sm:$0xff]
    %v979 = vld [vmem:[#allocation3 + $0x40] sm:$0xff]
    %v980 = vld [vmem:[#allocation3 + $0x48] sm:$0xff]
    %v981 = vld [vmem:[#allocation3 + $0x50] sm:$0xff]
    %v982 = vld [vmem:[#allocation3 + $0x58] sm:$0xff]
    %v983 = vld [vmem:[#allocation3 + $0x60] sm:$0xff]
    %v984 = vld [vmem:[#allocation3 + $0x68] sm:$0xff]
    %v985 = vld [vmem:[#allocation3 + $0x70] sm:$0xff]
    %v986 = vld [vmem:[#allocation3 + $0x78] sm:$0xff]
    %v987 = vld [vmem:[#allocation3 + $0x80] sm:$0xff]
    %v988 = vld [vmem:[#allocation3 + $0x88] sm:$0xff]
    %v989 = vld [vmem:[#allocation3 + $0x90] sm:$0xff]
    %v990 = vld [vmem:[#allocation3 + $0x98] sm:$0xff]
    %v991 = vld [vmem:[#allocation3 + $0xa0] sm:$0xff]
    %v992 = vld [vmem:[#allocation3 + $0xa8] sm:$0xff]
    %v993 = vld [vmem:[#allocation3 + $0xb0] sm:$0xff]
    %v994 = vld [vmem:[#allocation3 + $0xb8] sm:$0xff]
    %v995 = vld [vmem:[#allocation3 + $0xc0] sm:$0xff]
    %v996 = vld [vmem:[#allocation3 + $0xc8] sm:$0xff]
    %v997 = vld [vmem:[#allocation3 + $0xd0] sm:$0xff]
    %v998 = vld [vmem:[#allocation3 + $0xd8] sm:$0xff]
    %v999 = vld [vmem:[#allocation3 + $0xe0] sm:$0xff]
    %v1000 = vld [vmem:[#allocation3 + $0xe8] sm:$0xff]
    %v1001 = vld [vmem:[#allocation3 + $0xf0] sm:$0xff]
    %v1002 = vld [vmem:[#allocation3 + $0xf8] sm:$0xff]
    %v1004 = vrot.slane %v969, 1
    %v1038 = vunpack.c.l.b16 %v971
    %v1039 = vunpack.c.h.b16 %v971
    %v1040 = vunpack.c.l.b16 %v972
    %v1041 = vunpack.c.h.b16 %v972
    %v1042 = vunpack.c.l.b16 %v973
    %v1043 = vunpack.c.h.b16 %v973
    %v1044 = vunpack.c.l.b16 %v974
    %v1045 = vunpack.c.h.b16 %v974
    %v1046 = vunpack.c.l.b16 %v975
    %v1047 = vunpack.c.h.b16 %v975
    %v1048 = vunpack.c.l.b16 %v976
    %v1049 = vunpack.c.h.b16 %v976
    %v1050 = vunpack.c.l.b16 %v977
    %v1051 = vunpack.c.h.b16 %v977
    %v1052 = vunpack.c.l.b16 %v978
    %v1053 = vunpack.c.h.b16 %v978
    %v1054 = vunpack.c.l.b16 %v979
    %v1055 = vunpack.c.h.b16 %v979
    %v1056 = vunpack.c.l.b16 %v980
    %v1057 = vunpack.c.h.b16 %v980
    %v1058 = vunpack.c.l.b16 %v981
    %v1059 = vunpack.c.h.b16 %v981
    %v1060 = vunpack.c.l.b16 %v982
    %v1061 = vunpack.c.h.b16 %v982
    %v1062 = vunpack.c.l.b16 %v983
    %v1063 = vunpack.c.h.b16 %v983
    %v1064 = vunpack.c.l.b16 %v984
    %v1065 = vunpack.c.h.b16 %v984
    %v1066 = vunpack.c.l.b16 %v985
    %v1067 = vunpack.c.h.b16 %v985
    %v1068 = vunpack.c.l.b16 %v986
    %v1069 = vunpack.c.h.b16 %v986
    %v1070 = vunpack.c.l.b16 %v987
    %v1071 = vunpack.c.h.b16 %v987
    %v1072 = vunpack.c.l.b16 %v988
    %v1073 = vunpack.c.h.b16 %v988
    %v1074 = vunpack.c.l.b16 %v989
    %v1075 = vunpack.c.h.b16 %v989
    %v1076 = vunpack.c.l.b16 %v990
    %v1077 = vunpack.c.h.b16 %v990
    %v1078 = vunpack.c.l.b16 %v991
    %v1079 = vunpack.c.h.b16 %v991
    %v1080 = vunpack.c.l.b16 %v992
    %v1081 = vunpack.c.h.b16 %v992
    %v1082 = vunpack.c.l.b16 %v993
    %v1083 = vunpack.c.h.b16 %v993
    %v1084 = vunpack.c.l.b16 %v994
    %v1085 = vunpack.c.h.b16 %v994
    %v1086 = vunpack.c.l.b16 %v995
    %v1087 = vunpack.c.h.b16 %v995
    %v1088 = vunpack.c.l.b16 %v996
    %v1089 = vunpack.c.h.b16 %v996
    %v1090 = vunpack.c.l.b16 %v997
    %v1091 = vunpack.c.h.b16 %v997
    %v1092 = vunpack.c.l.b16 %v998
    %v1093 = vunpack.c.h.b16 %v998
    %v1094 = vunpack.c.l.b16 %v999
    %v1095 = vunpack.c.h.b16 %v999
    %v1096 = vunpack.c.l.b16 %v1000
    %v1097 = vunpack.c.h.b16 %v1000
    %v1098 = vunpack.c.l.b16 %v1001
    %v1099 = vunpack.c.h.b16 %v1001
    %v1100 = vunpack.c.l.b16 %v1002
    %v1101 = vunpack.c.h.b16 %v1002
    %v1102 = vpack.c.b16 %v1042, %v1038
    %v1103 = vpack.c.b16 %v1043, %v1039
    %v1104 = vpack.c.b16 %v1044, %v1040
    %v1105 = vpack.c.b16 %v1045, %v1041
    %v1106 = vpack.c.b16 %v1050, %v1046
    %v1107 = vpack.c.b16 %v1051, %v1047
    %v1108 = vpack.c.b16 %v1052, %v1048
    %v1109 = vpack.c.b16 %v1053, %v1049
    %v1110 = vpack.c.b16 %v1058, %v1054
    %v1111 = vpack.c.b16 %v1059, %v1055
    %v1112 = vpack.c.b16 %v1060, %v1056
    %v1113 = vpack.c.b16 %v1061, %v1057
    %v1114 = vpack.c.b16 %v1066, %v1062
    %v1115 = vpack.c.b16 %v1067, %v1063
    %v1116 = vpack.c.b16 %v1068, %v1064
    %v1117 = vpack.c.b16 %v1069, %v1065
    %v1118 = vpack.c.b16 %v1074, %v1070
    %v1119 = vpack.c.b16 %v1075, %v1071
    %v1120 = vpack.c.b16 %v1076, %v1072
    %v1121 = vpack.c.b16 %v1077, %v1073
    %v1122 = vpack.c.b16 %v1082, %v1078
    %v1123 = vpack.c.b16 %v1083, %v1079
    %v1124 = vpack.c.b16 %v1084, %v1080
    %v1125 = vpack.c.b16 %v1085, %v1081
    %v1126 = vpack.c.b16 %v1090, %v1086
    %v1127 = vpack.c.b16 %v1091, %v1087
    %v1128 = vpack.c.b16 %v1092, %v1088
    %v1129 = vpack.c.b16 %v1093, %v1089
    %v1130 = vpack.c.b16 %v1098, %v1094
    %v1131 = vpack.c.b16 %v1099, %v1095
    %v1132 = vpack.c.b16 %v1100, %v1096
    %v1133 = vpack.c.b16 %v1101, %v1097
    %1166 = vmatpush.bf16.msra.mxu0 %v1130
    %1167 = vmatpush.bf16.msra.mxu0 %v1126
    %1168 = vmatpush.bf16.msra.mxu0 %v1122
    %1169 = vmatpush.bf16.msra.mxu0 %v1118
    %1170 = vmatpush.bf16.msra.mxu0 %v1114
    %1171 = vmatpush.bf16.msra.mxu0 %v1110
    %1172 = vmatpush.bf16.msra.mxu0 %v1106
    %1173 = vmatpush.bf16.msra.mxu0 %v1102
    %1174 = vmatmul.bf16.gmra.mxu0 %v1004
    %v1175 = vpop.f32.mrf.mxu0
    %v1176 = vadd.f32 0.0, %v1175
    %v1177 = vpop.f32.mrf.mxu0
    %1178 = vdwg.mxu0
    %1179 = vmatpush.bf16.msra.mxu0 %v1131
    %1180 = vmatpush.bf16.msra.mxu0 %v1127
    %1181 = vmatpush.bf16.msra.mxu0 %v1123
    %1182 = vmatpush.bf16.msra.mxu0 %v1119
    %1183 = vmatpush.bf16.msra.mxu0 %v1115
    %1184 = vmatpush.bf16.msra.mxu0 %v1111
    %1185 = vmatpush.bf16.msra.mxu0 %v1107
    %1186 = vmatpush.bf16.msra.mxu0 %v1103
    %1187 = vmatmul.bf16.gmra.mxu0 %v1004
    %v1188 = vpop.f32.mrf.mxu0
    %v1189 = vadd.f32 0.0, %v1188
    %v1190 = vpop.f32.mrf.mxu0
    %1191 = vdwg.mxu0
    %1192 = vmatpush.bf16.msra.mxu0 %v1132
    %1193 = vmatpush.bf16.msra.mxu0 %v1128
    %1194 = vmatpush.bf16.msra.mxu0 %v1124
    %1195 = vmatpush.bf16.msra.mxu0 %v1120
    %1196 = vmatpush.bf16.msra.mxu0 %v1116
    %1197 = vmatpush.bf16.msra.mxu0 %v1112
    %1198 = vmatpush.bf16.msra.mxu0 %v1108
    %1199 = vmatpush.bf16.msra.mxu0 %v1104
    %1200 = vmatmul.bf16.gmra.mxu0 %v1004
    %v1201 = vpop.f32.mrf.mxu0
    %v1202 = vadd.f32 0.0, %v1201
    %v1203 = vpop.f32.mrf.mxu0
    %1204 = vdwg.mxu0
    %1205 = vmatpush.bf16.msra.mxu0 %v1133
    %1206 = vmatpush.bf16.msra.mxu0 %v1129
    %1207 = vmatpush.bf16.msra.mxu0 %v1125
    %1208 = vmatpush.bf16.msra.mxu0 %v1121
    %1209 = vmatpush.bf16.msra.mxu0 %v1117
    %1210 = vmatpush.bf16.msra.mxu0 %v1113
    %1211 = vmatpush.bf16.msra.mxu0 %v1109
    %1212 = vmatpush.bf16.msra.mxu0 %v1105
    %1213 = vmatmul.bf16.gmra.mxu0 %v1004
    %v1214 = vpop.f32.mrf.mxu0
    %v1215 = vadd.f32 0.0, %v1214
    %v1216 = vpop.f32.mrf.mxu0
    %1217 = vdwg.mxu0
    %v1222 = vrot.slane %v1176, 5
    %v1223 = vrot.slane %v1189, 5
    %v1224 = vrot.slane %v1202, 5
    %v1225 = vrot.slane %v1215, 5
    %v1230 = vadd.f32 %v91, %v1222
    %v1231 = vadd.f32 %v104, %v1223
    %v1232 = vadd.f32 %v117, %v1224
    %v1233 = vadd.f32 %v130, %v1225
    %v1234 = vmul.f32 %v1230, 0.5
    %v1235 = vmul.f32 %v1231, 0.5
    %v1236 = vmul.f32 %v1232, 0.5
    %v1237 = vtanh.pop %v1234
    %v1238 = vtanh.pop %v1235
    %v1239 = vtanh.pop %v1236
    %v1240 = vmul.f32 %v1237, 0.5
    %v1241 = vmul.f32 %v1238, 0.5
    %v1242 = vmul.f32 %v1239, 0.5
    %v1243 = vadd.f32 %v1240, 0.5
    %v1244 = vadd.f32 %v1241, 0.5
    %v1245 = vadd.f32 %v1242, 0.5
    %v1246 = vtanh.pop %v1233
    %v1248 = vrot.slane %v966, 7
    %v1250 = vmul.f32 %v1244, %v1248
    %v1251 = vmul.f32 %v1243, %v1246
    %v1252 = vadd.f32 %v1250, %v1251
    %v1253 = vtanh.pop %v1252
    %v1254 = vmul.f32 %v1245, %v1253
    %v1255 = vpack.c.bf16 %v1254, %v1254
    %1256 = vst [vmem:[#allocation2] sm:$0x8] %v1254
    %v1257 = vld [vmem:[#allocation3] sm:$0xff]
    %v1258 = vld [vmem:[#allocation3 + $0x8] sm:$0xff]
    %v1259 = vld [vmem:[#allocation3 + $0x10] sm:$0xff]
    %v1260 = vld [vmem:[#allocation3 + $0x18] sm:$0xff]
    %v1261 = vld [vmem:[#allocation3 + $0x20] sm:$0xff]
    %v1262 = vld [vmem:[#allocation3 + $0x28] sm:$0xff]
    %v1263 = vld [vmem:[#allocation3 + $0x30] sm:$0xff]
    %v1264 = vld [vmem:[#allocation3 + $0x38] sm:$0xff]
    %v1265 = vld [vmem:[#allocation3 + $0x40] sm:$0xff]
    %v1266 = vld [vmem:[#allocation3 + $0x48] sm:$0xff]
    %v1267 = vld [vmem:[#allocation3 + $0x50] sm:$0xff]
    %v1268 = vld [vmem:[#allocation3 + $0x58] sm:$0xff]
    %v1269 = vld [vmem:[#allocation3 + $0x60] sm:$0xff]
    %v1270 = vld [vmem:[#allocation3 + $0x68] sm:$0xff]
    %v1271 = vld [vmem:[#allocation3 + $0x70] sm:$0xff]
    %v1272 = vld [vmem:[#allocation3 + $0x78] sm:$0xff]
    %v1273 = vld [vmem:[#allocation3 + $0x80] sm:$0xff]
    %v1274 = vld [vmem:[#allocation3 + $0x88] sm:$0xff]
    %v1275 = vld [vmem:[#allocation3 + $0x90] sm:$0xff]
    %v1276 = vld [vmem:[#allocation3 + $0x98] sm:$0xff]
    %v1277 = vld [vmem:[#allocation3 + $0xa0] sm:$0xff]
    %v1278 = vld [vmem:[#allocation3 + $0xa8] sm:$0xff]
    %v1279 = vld [vmem:[#allocation3 + $0xb0] sm:$0xff]
    %v1280 = vld [vmem:[#allocation3 + $0xb8] sm:$0xff]
    %v1281 = vld [vmem:[#allocation3 + $0xc0] sm:$0xff]
    %v1282 = vld [vmem:[#allocation3 + $0xc8] sm:$0xff]
    %v1283 = vld [vmem:[#allocation3 + $0xd0] sm:$0xff]
    %v1284 = vld [vmem:[#allocation3 + $0xd8] sm:$0xff]
    %v1285 = vld [vmem:[#allocation3 + $0xe0] sm:$0xff]
    %v1286 = vld [vmem:[#allocation3 + $0xe8] sm:$0xff]
    %v1287 = vld [vmem:[#allocation3 + $0xf0] sm:$0xff]
    %v1288 = vld [vmem:[#allocation3 + $0xf8] sm:$0xff]
    %v1290 = vshrl.u32 %v1255, 16
    %v1292 = vrot.slane %v1290, 1
    %v1326 = vunpack.c.l.b16 %v1257
    %v1327 = vunpack.c.h.b16 %v1257
    %v1328 = vunpack.c.l.b16 %v1258
    %v1329 = vunpack.c.h.b16 %v1258
    %v1330 = vunpack.c.l.b16 %v1259
    %v1331 = vunpack.c.h.b16 %v1259
    %v1332 = vunpack.c.l.b16 %v1260
    %v1333 = vunpack.c.h.b16 %v1260
    %v1334 = vunpack.c.l.b16 %v1261
    %v1335 = vunpack.c.h.b16 %v1261
    %v1336 = vunpack.c.l.b16 %v1262
    %v1337 = vunpack.c.h.b16 %v1262
    %v1338 = vunpack.c.l.b16 %v1263
    %v1339 = vunpack.c.h.b16 %v1263
    %v1340 = vunpack.c.l.b16 %v1264
    %v1341 = vunpack.c.h.b16 %v1264
    %v1342 = vunpack.c.l.b16 %v1265
    %v1343 = vunpack.c.h.b16 %v1265
    %v1344 = vunpack.c.l.b16 %v1266
    %v1345 = vunpack.c.h.b16 %v1266
    %v1346 = vunpack.c.l.b16 %v1267
    %v1347 = vunpack.c.h.b16 %v1267
    %v1348 = vunpack.c.l.b16 %v1268
    %v1349 = vunpack.c.h.b16 %v1268
    %v1350 = vunpack.c.l.b16 %v1269
    %v1351 = vunpack.c.h.b16 %v1269
    %v1352 = vunpack.c.l.b16 %v1270
    %v1353 = vunpack.c.h.b16 %v1270
    %v1354 = vunpack.c.l.b16 %v1271
    %v1355 = vunpack.c.h.b16 %v1271
    %v1356 = vunpack.c.l.b16 %v1272
    %v1357 = vunpack.c.h.b16 %v1272
    %v1358 = vunpack.c.l.b16 %v1273
    %v1359 = vunpack.c.h.b16 %v1273
    %v1360 = vunpack.c.l.b16 %v1274
    %v1361 = vunpack.c.h.b16 %v1274
    %v1362 = vunpack.c.l.b16 %v1275
    %v1363 = vunpack.c.h.b16 %v1275
    %v1364 = vunpack.c.l.b16 %v1276
    %v1365 = vunpack.c.h.b16 %v1276
    %v1366 = vunpack.c.l.b16 %v1277
    %v1367 = vunpack.c.h.b16 %v1277
    %v1368 = vunpack.c.l.b16 %v1278
    %v1369 = vunpack.c.h.b16 %v1278
    %v1370 = vunpack.c.l.b16 %v1279
    %v1371 = vunpack.c.h.b16 %v1279
    %v1372 = vunpack.c.l.b16 %v1280
    %v1373 = vunpack.c.h.b16 %v1280
    %v1374 = vunpack.c.l.b16 %v1281
    %v1375 = vunpack.c.h.b16 %v1281
    %v1376 = vunpack.c.l.b16 %v1282
    %v1377 = vunpack.c.h.b16 %v1282
    %v1378 = vunpack.c.l.b16 %v1283
    %v1379 = vunpack.c.h.b16 %v1283
    %v1380 = vunpack.c.l.b16 %v1284
    %v1381 = vunpack.c.h.b16 %v1284
    %v1382 = vunpack.c.l.b16 %v1285
    %v1383 = vunpack.c.h.b16 %v1285
    %v1384 = vunpack.c.l.b16 %v1286
    %v1385 = vunpack.c.h.b16 %v1286
    %v1386 = vunpack.c.l.b16 %v1287
    %v1387 = vunpack.c.h.b16 %v1287
    %v1388 = vunpack.c.l.b16 %v1288
    %v1389 = vunpack.c.h.b16 %v1288
    %v1390 = vpack.c.b16 %v1330, %v1326
    %v1391 = vpack.c.b16 %v1331, %v1327
    %v1392 = vpack.c.b16 %v1332, %v1328
    %v1393 = vpack.c.b16 %v1333, %v1329
    %v1394 = vpack.c.b16 %v1338, %v1334
    %v1395 = vpack.c.b16 %v1339, %v1335
    %v1396 = vpack.c.b16 %v1340, %v1336
    %v1397 = vpack.c.b16 %v1341, %v1337
    %v1398 = vpack.c.b16 %v1346, %v1342
    %v1399 = vpack.c.b16 %v1347, %v1343
    %v1400 = vpack.c.b16 %v1348, %v1344
    %v1401 = vpack.c.b16 %v1349, %v1345
    %v1402 = vpack.c.b16 %v1354, %v1350
    %v1403 = vpack.c.b16 %v1355, %v1351
    %v1404 = vpack.c.b16 %v1356, %v1352
    %v1405 = vpack.c.b16 %v1357, %v1353
    %v1406 = vpack.c.b16 %v1362, %v1358
    %v1407 = vpack.c.b16 %v1363, %v1359
    %v1408 = vpack.c.b16 %v1364, %v1360
    %v1409 = vpack.c.b16 %v1365, %v1361
    %v1410 = vpack.c.b16 %v1370, %v1366
    %v1411 = vpack.c.b16 %v1371, %v1367
    %v1412 = vpack.c.b16 %v1372, %v1368
    %v1413 = vpack.c.b16 %v1373, %v1369
    %v1414 = vpack.c.b16 %v1378, %v1374
    %v1415 = vpack.c.b16 %v1379, %v1375
    %v1416 = vpack.c.b16 %v1380, %v1376
    %v1417 = vpack.c.b16 %v1381, %v1377
    %v1418 = vpack.c.b16 %v1386, %v1382
    %v1419 = vpack.c.b16 %v1387, %v1383
    %v1420 = vpack.c.b16 %v1388, %v1384
    %v1421 = vpack.c.b16 %v1389, %v1385
    %1454 = vmatpush.bf16.msra.mxu0 %v1418
    %1455 = vmatpush.bf16.msra.mxu0 %v1414
    %1456 = vmatpush.bf16.msra.mxu0 %v1410
    %1457 = vmatpush.bf16.msra.mxu0 %v1406
    %1458 = vmatpush.bf16.msra.mxu0 %v1402
    %1459 = vmatpush.bf16.msra.mxu0 %v1398
    %1460 = vmatpush.bf16.msra.mxu0 %v1394
    %1461 = vmatpush.bf16.msra.mxu0 %v1390
    %1462 = vmatmul.bf16.gmra.mxu0 %v1292
    %v1463 = vpop.f32.mrf.mxu0
    %v1464 = vadd.f32 0.0, %v1463
    %v1465 = vpop.f32.mrf.mxu0
    %1466 = vdwg.mxu0
    %1467 = vmatpush.bf16.msra.mxu0 %v1419
    %1468 = vmatpush.bf16.msra.mxu0 %v1415
    %1469 = vmatpush.bf16.msra.mxu0 %v1411
    %1470 = vmatpush.bf16.msra.mxu0 %v1407
    %1471 = vmatpush.bf16.msra.mxu0 %v1403
    %1472 = vmatpush.bf16.msra.mxu0 %v1399
    %1473 = vmatpush.bf16.msra.mxu0 %v1395
    %1474 = vmatpush.bf16.msra.mxu0 %v1391
    %1475 = vmatmul.bf16.gmra.mxu0 %v1292
    %v1476 = vpop.f32.mrf.mxu0
    %v1477 = vadd.f32 0.0, %v1476
    %v1478 = vpop.f32.mrf.mxu0
    %1479 = vdwg.mxu0
    %1480 = vmatpush.bf16.msra.mxu0 %v1420
    %1481 = vmatpush.bf16.msra.mxu0 %v1416
    %1482 = vmatpush.bf16.msra.mxu0 %v1412
    %1483 = vmatpush.bf16.msra.mxu0 %v1408
    %1484 = vmatpush.bf16.msra.mxu0 %v1404
    %1485 = vmatpush.bf16.msra.mxu0 %v1400
    %1486 = vmatpush.bf16.msra.mxu0 %v1396
    %1487 = vmatpush.bf16.msra.mxu0 %v1392
    %1488 = vmatmul.bf16.gmra.mxu0 %v1292
    %v1489 = vpop.f32.mrf.mxu0
    %v1490 = vadd.f32 0.0, %v1489
    %v1491 = vpop.f32.mrf.mxu0
    %1492 = vdwg.mxu0
    %1493 = vmatpush.bf16.msra.mxu0 %v1421
    %1494 = vmatpush.bf16.msra.mxu0 %v1417
    %1495 = vmatpush.bf16.msra.mxu0 %v1413
    %1496 = vmatpush.bf16.msra.mxu0 %v1409
    %1497 = vmatpush.bf16.msra.mxu0 %v1405
    %1498 = vmatpush.bf16.msra.mxu0 %v1401
    %1499 = vmatpush.bf16.msra.mxu0 %v1397
    %1500 = vmatpush.bf16.msra.mxu0 %v1393
    %1501 = vmatmul.bf16.gmra.mxu0 %v1292
    %v1502 = vpop.f32.mrf.mxu0
    %v1503 = vadd.f32 0.0, %v1502
    %v1504 = vpop.f32.mrf.mxu0
    %1505 = vdwg.mxu0
    %v1510 = vrot.slane %v1464, 4
    %v1511 = vrot.slane %v1477, 4
    %v1512 = vrot.slane %v1490, 4
    %v1513 = vrot.slane %v1503, 4
    %v1518 = vadd.f32 %v91, %v1510
    %v1519 = vadd.f32 %v104, %v1511
    %v1520 = vadd.f32 %v117, %v1512
    %v1521 = vadd.f32 %v130, %v1513
    %v1522 = vmul.f32 %v1518, 0.5
    %v1523 = vmul.f32 %v1519, 0.5
    %v1524 = vmul.f32 %v1520, 0.5
    %v1525 = vtanh.pop %v1522
    %v1526 = vtanh.pop %v1523
    %v1527 = vtanh.pop %v1524
    %v1528 = vmul.f32 %v1525, 0.5
    %v1529 = vmul.f32 %v1526, 0.5
    %v1530 = vmul.f32 %v1527, 0.5
    %v1531 = vadd.f32 %v1528, 0.5
    %v1532 = vadd.f32 %v1529, 0.5
    %v1533 = vadd.f32 %v1530, 0.5
    %v1534 = vtanh.pop %v1521
    %v1536 = vrot.slane %v1252, 7
    %v1538 = vmul.f32 %v1532, %v1536
    %v1539 = vmul.f32 %v1531, %v1534
    %v1540 = vadd.f32 %v1538, %v1539
    %v1541 = vtanh.pop %v1540
    %v1542 = vmul.f32 %v1533, %v1541
    %v1543 = vpack.c.bf16 %v1542, %v1542
    %1544 = vst [vmem:[#allocation2] sm:$0x10] %v1542
    %v1545 = vld [vmem:[#allocation3] sm:$0xff]
    %v1546 = vld [vmem:[#allocation3 + $0x8] sm:$0xff]
    %v1547 = vld [vmem:[#allocation3 + $0x10] sm:$0xff]
    %v1548 = vld [vmem:[#allocation3 + $0x18] sm:$0xff]
    %v1549 = vld [vmem:[#allocation3 + $0x20] sm:$0xff]
    %v1550 = vld [vmem:[#allocation3 + $0x28] sm:$0xff]
    %v1551 = vld [vmem:[#allocation3 + $0x30] sm:$0xff]
    %v1552 = vld [vmem:[#allocation3 + $0x38] sm:$0xff]
    %v1553 = vld [vmem:[#allocation3 + $0x40] sm:$0xff]
    %v1554 = vld [vmem:[#allocation3 + $0x48] sm:$0xff]
    %v1555 = vld [vmem:[#allocation3 + $0x50] sm:$0xff]
    %v1556 = vld [vmem:[#allocation3 + $0x58] sm:$0xff]
    %v1557 = vld [vmem:[#allocation3 + $0x60] sm:$0xff]
    %v1558 = vld [vmem:[#allocation3 + $0x68] sm:$0xff]
    %v1559 = vld [vmem:[#allocation3 + $0x70] sm:$0xff]
    %v1560 = vld [vmem:[#allocation3 + $0x78] sm:$0xff]
    %v1561 = vld [vmem:[#allocation3 + $0x80] sm:$0xff]
    %v1562 = vld [vmem:[#allocation3 + $0x88] sm:$0xff]
    %v1563 = vld [vmem:[#allocation3 + $0x90] sm:$0xff]
    %v1564 = vld [vmem:[#allocation3 + $0x98] sm:$0xff]
    %v1565 = vld [vmem:[#allocation3 + $0xa0] sm:$0xff]
    %v1566 = vld [vmem:[#allocation3 + $0xa8] sm:$0xff]
    %v1567 = vld [vmem:[#allocation3 + $0xb0] sm:$0xff]
    %v1568 = vld [vmem:[#allocation3 + $0xb8] sm:$0xff]
    %v1569 = vld [vmem:[#allocation3 + $0xc0] sm:$0xff]
    %v1570 = vld [vmem:[#allocation3 + $0xc8] sm:$0xff]
    %v1571 = vld [vmem:[#allocation3 + $0xd0] sm:$0xff]
    %v1572 = vld [vmem:[#allocation3 + $0xd8] sm:$0xff]
    %v1573 = vld [vmem:[#allocation3 + $0xe0] sm:$0xff]
    %v1574 = vld [vmem:[#allocation3 + $0xe8] sm:$0xff]
    %v1575 = vld [vmem:[#allocation3 + $0xf0] sm:$0xff]
    %v1576 = vld [vmem:[#allocation3 + $0xf8] sm:$0xff]
    %v1578 = vrot.slane %v1543, 2
    %v1612 = vunpack.c.l.b16 %v1545
    %v1613 = vunpack.c.h.b16 %v1545
    %v1614 = vunpack.c.l.b16 %v1546
    %v1615 = vunpack.c.h.b16 %v1546
    %v1616 = vunpack.c.l.b16 %v1547
    %v1617 = vunpack.c.h.b16 %v1547
    %v1618 = vunpack.c.l.b16 %v1548
    %v1619 = vunpack.c.h.b16 %v1548
    %v1620 = vunpack.c.l.b16 %v1549
    %v1621 = vunpack.c.h.b16 %v1549
    %v1622 = vunpack.c.l.b16 %v1550
    %v1623 = vunpack.c.h.b16 %v1550
    %v1624 = vunpack.c.l.b16 %v1551
    %v1625 = vunpack.c.h.b16 %v1551
    %v1626 = vunpack.c.l.b16 %v1552
    %v1627 = vunpack.c.h.b16 %v1552
    %v1628 = vunpack.c.l.b16 %v1553
    %v1629 = vunpack.c.h.b16 %v1553
    %v1630 = vunpack.c.l.b16 %v1554
    %v1631 = vunpack.c.h.b16 %v1554
    %v1632 = vunpack.c.l.b16 %v1555
    %v1633 = vunpack.c.h.b16 %v1555
    %v1634 = vunpack.c.l.b16 %v1556
    %v1635 = vunpack.c.h.b16 %v1556
    %v1636 = vunpack.c.l.b16 %v1557
    %v1637 = vunpack.c.h.b16 %v1557
    %v1638 = vunpack.c.l.b16 %v1558
    %v1639 = vunpack.c.h.b16 %v1558
    %v1640 = vunpack.c.l.b16 %v1559
    %v1641 = vunpack.c.h.b16 %v1559
    %v1642 = vunpack.c.l.b16 %v1560
    %v1643 = vunpack.c.h.b16 %v1560
    %v1644 = vunpack.c.l.b16 %v1561
    %v1645 = vunpack.c.h.b16 %v1561
    %v1646 = vunpack.c.l.b16 %v1562
    %v1647 = vunpack.c.h.b16 %v1562
    %v1648 = vunpack.c.l.b16 %v1563
    %v1649 = vunpack.c.h.b16 %v1563
    %v1650 = vunpack.c.l.b16 %v1564
    %v1651 = vunpack.c.h.b16 %v1564
    %v1652 = vunpack.c.l.b16 %v1565
    %v1653 = vunpack.c.h.b16 %v1565
    %v1654 = vunpack.c.l.b16 %v1566
    %v1655 = vunpack.c.h.b16 %v1566
    %v1656 = vunpack.c.l.b16 %v1567
    %v1657 = vunpack.c.h.b16 %v1567
    %v1658 = vunpack.c.l.b16 %v1568
    %v1659 = vunpack.c.h.b16 %v1568
    %v1660 = vunpack.c.l.b16 %v1569
    %v1661 = vunpack.c.h.b16 %v1569
    %v1662 = vunpack.c.l.b16 %v1570
    %v1663 = vunpack.c.h.b16 %v1570
    %v1664 = vunpack.c.l.b16 %v1571
    %v1665 = vunpack.c.h.b16 %v1571
    %v1666 = vunpack.c.l.b16 %v1572
    %v1667 = vunpack.c.h.b16 %v1572
    %v1668 = vunpack.c.l.b16 %v1573
    %v1669 = vunpack.c.h.b16 %v1573
    %v1670 = vunpack.c.l.b16 %v1574
    %v1671 = vunpack.c.h.b16 %v1574
    %v1672 = vunpack.c.l.b16 %v1575
    %v1673 = vunpack.c.h.b16 %v1575
    %v1674 = vunpack.c.l.b16 %v1576
    %v1675 = vunpack.c.h.b16 %v1576
    %v1676 = vpack.c.b16 %v1616, %v1612
    %v1677 = vpack.c.b16 %v1617, %v1613
    %v1678 = vpack.c.b16 %v1618, %v1614
    %v1679 = vpack.c.b16 %v1619, %v1615
    %v1680 = vpack.c.b16 %v1624, %v1620
    %v1681 = vpack.c.b16 %v1625, %v1621
    %v1682 = vpack.c.b16 %v1626, %v1622
    %v1683 = vpack.c.b16 %v1627, %v1623
    %v1684 = vpack.c.b16 %v1632, %v1628
    %v1685 = vpack.c.b16 %v1633, %v1629
    %v1686 = vpack.c.b16 %v1634, %v1630
    %v1687 = vpack.c.b16 %v1635, %v1631
    %v1688 = vpack.c.b16 %v1640, %v1636
    %v1689 = vpack.c.b16 %v1641, %v1637
    %v1690 = vpack.c.b16 %v1642, %v1638
    %v1691 = vpack.c.b16 %v1643, %v1639
    %v1692 = vpack.c.b16 %v1648, %v1644
    %v1693 = vpack.c.b16 %v1649, %v1645
    %v1694 = vpack.c.b16 %v1650, %v1646
    %v1695 = vpack.c.b16 %v1651, %v1647
    %v1696 = vpack.c.b16 %v1656, %v1652
    %v1697 = vpack.c.b16 %v1657, %v1653
    %v1698 = vpack.c.b16 %v1658, %v1654
    %v1699 = vpack.c.b16 %v1659, %v1655
    %v1700 = vpack.c.b16 %v1664, %v1660
    %v1701 = vpack.c.b16 %v1665, %v1661
    %v1702 = vpack.c.b16 %v1666, %v1662
    %v1703 = vpack.c.b16 %v1667, %v1663
    %v1704 = vpack.c.b16 %v1672, %v1668
    %v1705 = vpack.c.b16 %v1673, %v1669
    %v1706 = vpack.c.b16 %v1674, %v1670
    %v1707 = vpack.c.b16 %v1675, %v1671
    %1740 = vmatpush.bf16.msra.mxu0 %v1704
    %1741 = vmatpush.bf16.msra.mxu0 %v1700
    %1742 = vmatpush.bf16.msra.mxu0 %v1696
    %1743 = vmatpush.bf16.msra.mxu0 %v1692
    %1744 = vmatpush.bf16.msra.mxu0 %v1688
    %1745 = vmatpush.bf16.msra.mxu0 %v1684
    %1746 = vmatpush.bf16.msra.mxu0 %v1680
    %1747 = vmatpush.bf16.msra.mxu0 %v1676
    %1748 = vmatmul.bf16.gmra.mxu0 %v1578
    %v1749 = vpop.f32.mrf.mxu0
    %v1750 = vadd.f32 0.0, %v1749
    %v1751 = vpop.f32.mrf.mxu0
    %1752 = vdwg.mxu0
    %1753 = vmatpush.bf16.msra.mxu0 %v1705
    %1754 = vmatpush.bf16.msra.mxu0 %v1701
    %1755 = vmatpush.bf16.msra.mxu0 %v1697
    %1756 = vmatpush.bf16.msra.mxu0 %v1693
    %1757 = vmatpush.bf16.msra.mxu0 %v1689
    %1758 = vmatpush.bf16.msra.mxu0 %v1685
    %1759 = vmatpush.bf16.msra.mxu0 %v1681
    %1760 = vmatpush.bf16.msra.mxu0 %v1677
    %1761 = vmatmul.bf16.gmra.mxu0 %v1578
    %v1762 = vpop.f32.mrf.mxu0
    %v1763 = vadd.f32 0.0, %v1762
    %v1764 = vpop.f32.mrf.mxu0
    %1765 = vdwg.mxu0
    %1766 = vmatpush.bf16.msra.mxu0 %v1706
    %1767 = vmatpush.bf16.msra.mxu0 %v1702
    %1768 = vmatpush.bf16.msra.mxu0 %v1698
    %1769 = vmatpush.bf16.msra.mxu0 %v1694
    %1770 = vmatpush.bf16.msra.mxu0 %v1690
    %1771 = vmatpush.bf16.msra.mxu0 %v1686
    %1772 = vmatpush.bf16.msra.mxu0 %v1682
    %1773 = vmatpush.bf16.msra.mxu0 %v1678
    %1774 = vmatmul.bf16.gmra.mxu0 %v1578
    %v1775 = vpop.f32.mrf.mxu0
    %v1776 = vadd.f32 0.0, %v1775
    %v1777 = vpop.f32.mrf.mxu0
    %1778 = vdwg.mxu0
    %1779 = vmatpush.bf16.msra.mxu0 %v1707
    %1780 = vmatpush.bf16.msra.mxu0 %v1703
    %1781 = vmatpush.bf16.msra.mxu0 %v1699
    %1782 = vmatpush.bf16.msra.mxu0 %v1695
    %1783 = vmatpush.bf16.msra.mxu0 %v1691
    %1784 = vmatpush.bf16.msra.mxu0 %v1687
    %1785 = vmatpush.bf16.msra.mxu0 %v1683
    %1786 = vmatpush.bf16.msra.mxu0 %v1679
    %1787 = vmatmul.bf16.gmra.mxu0 %v1578
    %v1788 = vpop.f32.mrf.mxu0
    %v1789 = vadd.f32 0.0, %v1788
    %v1790 = vpop.f32.mrf.mxu0
    %1791 = vdwg.mxu0
    %v1796 = vrot.slane %v1750, 3
    %v1797 = vrot.slane %v1763, 3
    %v1798 = vrot.slane %v1776, 3
    %v1799 = vrot.slane %v1789, 3
    %v1804 = vadd.f32 %v91, %v1796
    %v1805 = vadd.f32 %v104, %v1797
    %v1806 = vadd.f32 %v117, %v1798
    %v1807 = vadd.f32 %v130, %v1799
    %v1808 = vmul.f32 %v1804, 0.5
    %v1809 = vmul.f32 %v1805, 0.5
    %v1810 = vmul.f32 %v1806, 0.5
    %v1811 = vtanh.pop %v1808
    %v1812 = vtanh.pop %v1809
    %v1813 = vtanh.pop %v1810
    %v1814 = vmul.f32 %v1811, 0.5
    %v1815 = vmul.f32 %v1812, 0.5
    %v1816 = vmul.f32 %v1813, 0.5
    %v1817 = vadd.f32 %v1814, 0.5
    %v1818 = vadd.f32 %v1815, 0.5
    %v1819 = vadd.f32 %v1816, 0.5
    %v1820 = vtanh.pop %v1807
    %v1822 = vrot.slane %v1540, 7
    %v1824 = vmul.f32 %v1818, %v1822
    %v1825 = vmul.f32 %v1817, %v1820
    %v1826 = vadd.f32 %v1824, %v1825
    %v1827 = vtanh.pop %v1826
    %v1828 = vmul.f32 %v1819, %v1827
    %v1829 = vpack.c.bf16 %v1828, %v1828
    %1830 = vst [vmem:[#allocation2] sm:$0x20] %v1828
    %v1831 = vld [vmem:[#allocation3] sm:$0xff]
    %v1832 = vld [vmem:[#allocation3 + $0x8] sm:$0xff]
    %v1833 = vld [vmem:[#allocation3 + $0x10] sm:$0xff]
    %v1834 = vld [vmem:[#allocation3 + $0x18] sm:$0xff]
    %v1835 = vld [vmem:[#allocation3 + $0x20] sm:$0xff]
    %v1836 = vld [vmem:[#allocation3 + $0x28] sm:$0xff]
    %v1837 = vld [vmem:[#allocation3 + $0x30] sm:$0xff]
    %v1838 = vld [vmem:[#allocation3 + $0x38] sm:$0xff]
    %v1839 = vld [vmem:[#allocation3 + $0x40] sm:$0xff]
    %v1840 = vld [vmem:[#allocation3 + $0x48] sm:$0xff]
    %v1841 = vld [vmem:[#allocation3 + $0x50] sm:$0xff]
    %v1842 = vld [vmem:[#allocation3 + $0x58] sm:$0xff]
    %v1843 = vld [vmem:[#allocation3 + $0x60] sm:$0xff]
    %v1844 = vld [vmem:[#allocation3 + $0x68] sm:$0xff]
    %v1845 = vld [vmem:[#allocation3 + $0x70] sm:$0xff]
    %v1846 = vld [vmem:[#allocation3 + $0x78] sm:$0xff]
    %v1847 = vld [vmem:[#allocation3 + $0x80] sm:$0xff]
    %v1848 = vld [vmem:[#allocation3 + $0x88] sm:$0xff]
    %v1849 = vld [vmem:[#allocation3 + $0x90] sm:$0xff]
    %v1850 = vld [vmem:[#allocation3 + $0x98] sm:$0xff]
    %v1851 = vld [vmem:[#allocation3 + $0xa0] sm:$0xff]
    %v1852 = vld [vmem:[#allocation3 + $0xa8] sm:$0xff]
    %v1853 = vld [vmem:[#allocation3 + $0xb0] sm:$0xff]
    %v1854 = vld [vmem:[#allocation3 + $0xb8] sm:$0xff]
    %v1855 = vld [vmem:[#allocation3 + $0xc0] sm:$0xff]
    %v1856 = vld [vmem:[#allocation3 + $0xc8] sm:$0xff]
    %v1857 = vld [vmem:[#allocation3 + $0xd0] sm:$0xff]
    %v1858 = vld [vmem:[#allocation3 + $0xd8] sm:$0xff]
    %v1859 = vld [vmem:[#allocation3 + $0xe0] sm:$0xff]
    %v1860 = vld [vmem:[#allocation3 + $0xe8] sm:$0xff]
    %v1861 = vld [vmem:[#allocation3 + $0xf0] sm:$0xff]
    %v1862 = vld [vmem:[#allocation3 + $0xf8] sm:$0xff]
    %v1864 = vshrl.u32 %v1829, 16
    %v1866 = vrot.slane %v1864, 2
    %v1900 = vunpack.c.l.b16 %v1831
    %v1901 = vunpack.c.h.b16 %v1831
    %v1902 = vunpack.c.l.b16 %v1832
    %v1903 = vunpack.c.h.b16 %v1832
    %v1904 = vunpack.c.l.b16 %v1833
    %v1905 = vunpack.c.h.b16 %v1833
    %v1906 = vunpack.c.l.b16 %v1834
    %v1907 = vunpack.c.h.b16 %v1834
    %v1908 = vunpack.c.l.b16 %v1835
    %v1909 = vunpack.c.h.b16 %v1835
    %v1910 = vunpack.c.l.b16 %v1836
    %v1911 = vunpack.c.h.b16 %v1836
    %v1912 = vunpack.c.l.b16 %v1837
    %v1913 = vunpack.c.h.b16 %v1837
    %v1914 = vunpack.c.l.b16 %v1838
    %v1915 = vunpack.c.h.b16 %v1838
    %v1916 = vunpack.c.l.b16 %v1839
    %v1917 = vunpack.c.h.b16 %v1839
    %v1918 = vunpack.c.l.b16 %v1840
    %v1919 = vunpack.c.h.b16 %v1840
    %v1920 = vunpack.c.l.b16 %v1841
    %v1921 = vunpack.c.h.b16 %v1841
    %v1922 = vunpack.c.l.b16 %v1842
    %v1923 = vunpack.c.h.b16 %v1842
    %v1924 = vunpack.c.l.b16 %v1843
    %v1925 = vunpack.c.h.b16 %v1843
    %v1926 = vunpack.c.l.b16 %v1844
    %v1927 = vunpack.c.h.b16 %v1844
    %v1928 = vunpack.c.l.b16 %v1845
    %v1929 = vunpack.c.h.b16 %v1845
    %v1930 = vunpack.c.l.b16 %v1846
    %v1931 = vunpack.c.h.b16 %v1846
    %v1932 = vunpack.c.l.b16 %v1847
    %v1933 = vunpack.c.h.b16 %v1847
    %v1934 = vunpack.c.l.b16 %v1848
    %v1935 = vunpack.c.h.b16 %v1848
    %v1936 = vunpack.c.l.b16 %v1849
    %v1937 = vunpack.c.h.b16 %v1849
    %v1938 = vunpack.c.l.b16 %v1850
    %v1939 = vunpack.c.h.b16 %v1850
    %v1940 = vunpack.c.l.b16 %v1851
    %v1941 = vunpack.c.h.b16 %v1851
    %v1942 = vunpack.c.l.b16 %v1852
    %v1943 = vunpack.c.h.b16 %v1852
    %v1944 = vunpack.c.l.b16 %v1853
    %v1945 = vunpack.c.h.b16 %v1853
    %v1946 = vunpack.c.l.b16 %v1854
    %v1947 = vunpack.c.h.b16 %v1854
    %v1948 = vunpack.c.l.b16 %v1855
    %v1949 = vunpack.c.h.b16 %v1855
    %v1950 = vunpack.c.l.b16 %v1856
    %v1951 = vunpack.c.h.b16 %v1856
    %v1952 = vunpack.c.l.b16 %v1857
    %v1953 = vunpack.c.h.b16 %v1857
    %v1954 = vunpack.c.l.b16 %v1858
    %v1955 = vunpack.c.h.b16 %v1858
    %v1956 = vunpack.c.l.b16 %v1859
    %v1957 = vunpack.c.h.b16 %v1859
    %v1958 = vunpack.c.l.b16 %v1860
    %v1959 = vunpack.c.h.b16 %v1860
    %v1960 = vunpack.c.l.b16 %v1861
    %v1961 = vunpack.c.h.b16 %v1861
    %v1962 = vunpack.c.l.b16 %v1862
    %v1963 = vunpack.c.h.b16 %v1862
    %v1964 = vpack.c.b16 %v1904, %v1900
    %v1965 = vpack.c.b16 %v1905, %v1901
    %v1966 = vpack.c.b16 %v1906, %v1902
    %v1967 = vpack.c.b16 %v1907, %v1903
    %v1968 = vpack.c.b16 %v1912, %v1908
    %v1969 = vpack.c.b16 %v1913, %v1909
    %v1970 = vpack.c.b16 %v1914, %v1910
    %v1971 = vpack.c.b16 %v1915, %v1911
    %v1972 = vpack.c.b16 %v1920, %v1916
    %v1973 = vpack.c.b16 %v1921, %v1917
    %v1974 = vpack.c.b16 %v1922, %v1918
    %v1975 = vpack.c.b16 %v1923, %v1919
    %v1976 = vpack.c.b16 %v1928, %v1924
    %v1977 = vpack.c.b16 %v1929, %v1925
    %v1978 = vpack.c.b16 %v1930, %v1926
    %v1979 = vpack.c.b16 %v1931, %v1927
    %v1980 = vpack.c.b16 %v1936, %v1932
    %v1981 = vpack.c.b16 %v1937, %v1933
    %v1982 = vpack.c.b16 %v1938, %v1934
    %v1983 = vpack.c.b16 %v1939, %v1935
    %v1984 = vpack.c.b16 %v1944, %v1940
    %v1985 = vpack.c.b16 %v1945, %v1941
    %v1986 = vpack.c.b16 %v1946, %v1942
    %v1987 = vpack.c.b16 %v1947, %v1943
    %v1988 = vpack.c.b16 %v1952, %v1948
    %v1989 = vpack.c.b16 %v1953, %v1949
    %v1990 = vpack.c.b16 %v1954, %v1950
    %v1991 = vpack.c.b16 %v1955, %v1951
    %v1992 = vpack.c.b16 %v1960, %v1956
    %v1993 = vpack.c.b16 %v1961, %v1957
    %v1994 = vpack.c.b16 %v1962, %v1958
    %v1995 = vpack.c.b16 %v1963, %v1959
    %2028 = vmatpush.bf16.msra.mxu0 %v1992
    %2029 = vmatpush.bf16.msra.mxu0 %v1988
    %2030 = vmatpush.bf16.msra.mxu0 %v1984
    %2031 = vmatpush.bf16.msra.mxu0 %v1980
    %2032 = vmatpush.bf16.msra.mxu0 %v1976
    %2033 = vmatpush.bf16.msra.mxu0 %v1972
    %2034 = vmatpush.bf16.msra.mxu0 %v1968
    %2035 = vmatpush.bf16.msra.mxu0 %v1964
    %2036 = vmatmul.bf16.gmra.mxu0 %v1866
    %v2037 = vpop.f32.mrf.mxu0
    %v2038 = vadd.f32 0.0, %v2037
    %v2039 = vpop.f32.mrf.mxu0
    %2040 = vdwg.mxu0
    %2041 = vmatpush.bf16.msra.mxu0 %v1993
    %2042 = vmatpush.bf16.msra.mxu0 %v1989
    %2043 = vmatpush.bf16.msra.mxu0 %v1985
    %2044 = vmatpush.bf16.msra.mxu0 %v1981
    %2045 = vmatpush.bf16.msra.mxu0 %v1977
    %2046 = vmatpush.bf16.msra.mxu0 %v1973
    %2047 = vmatpush.bf16.msra.mxu0 %v1969
    %2048 = vmatpush.bf16.msra.mxu0 %v1965
    %2049 = vmatmul.bf16.gmra.mxu0 %v1866
    %v2050 = vpop.f32.mrf.mxu0
    %v2051 = vadd.f32 0.0, %v2050
    %v2052 = vpop.f32.mrf.mxu0
    %2053 = vdwg.mxu0
    %2054 = vmatpush.bf16.msra.mxu0 %v1994
    %2055 = vmatpush.bf16.msra.mxu0 %v1990
    %2056 = vmatpush.bf16.msra.mxu0 %v1986
    %2057 = vmatpush.bf16.msra.mxu0 %v1982
    %2058 = vmatpush.bf16.msra.mxu0 %v1978
    %2059 = vmatpush.bf16.msra.mxu0 %v1974
    %2060 = vmatpush.bf16.msra.mxu0 %v1970
    %2061 = vmatpush.bf16.msra.mxu0 %v1966
    %2062 = vmatmul.bf16.gmra.mxu0 %v1866
    %v2063 = vpop.f32.mrf.mxu0
    %v2064 = vadd.f32 0.0, %v2063
    %v2065 = vpop.f32.mrf.mxu0
    %2066 = vdwg.mxu0
    %2067 = vmatpush.bf16.msra.mxu0 %v1995
    %2068 = vmatpush.bf16.msra.mxu0 %v1991
    %2069 = vmatpush.bf16.msra.mxu0 %v1987
    %2070 = vmatpush.bf16.msra.mxu0 %v1983
    %2071 = vmatpush.bf16.msra.mxu0 %v1979
    %2072 = vmatpush.bf16.msra.mxu0 %v1975
    %2073 = vmatpush.bf16.msra.mxu0 %v1971
    %2074 = vmatpush.bf16.msra.mxu0 %v1967
    %2075 = vmatmul.bf16.gmra.mxu0 %v1866
    %v2076 = vpop.f32.mrf.mxu0
    %v2077 = vadd.f32 0.0, %v2076
    %v2078 = vpop.f32.mrf.mxu0
    %2079 = vdwg.mxu0
    %v2084 = vrot.slane %v2038, 2
    %v2085 = vrot.slane %v2051, 2
    %v2086 = vrot.slane %v2064, 2
    %v2087 = vrot.slane %v2077, 2
    %v2092 = vadd.f32 %v91, %v2084
    %v2093 = vadd.f32 %v104, %v2085
    %v2094 = vadd.f32 %v117, %v2086
    %v2095 = vadd.f32 %v130, %v2087
    %v2096 = vmul.f32 %v2092, 0.5
    %v2097 = vmul.f32 %v2093, 0.5
    %v2098 = vmul.f32 %v2094, 0.5
    %v2099 = vtanh.pop %v2096
    %v2100 = vtanh.pop %v2097
    %v2101 = vtanh.pop %v2098
    %v2102 = vmul.f32 %v2099, 0.5
    %v2103 = vmul.f32 %v2100, 0.5
    %v2104 = vmul.f32 %v2101, 0.5
    %v2105 = vadd.f32 %v2102, 0.5
    %v2106 = vadd.f32 %v2103, 0.5
    %v2107 = vadd.f32 %v2104, 0.5
    %v2108 = vtanh.pop %v2095
    %v2110 = vrot.slane %v1826, 7
    %v2112 = vmul.f32 %v2106, %v2110
    %v2113 = vmul.f32 %v2105, %v2108
    %v2114 = vadd.f32 %v2112, %v2113
    %v2115 = vtanh.pop %v2114
    %v2116 = vmul.f32 %v2107, %v2115
    %v2117 = vpack.c.bf16 %v2116, %v2116
    %2118 = vst [vmem:[#allocation2] sm:$0x40] %v2116
    %v2119 = vld [vmem:[#allocation3] sm:$0xff]
    %v2120 = vld [vmem:[#allocation3 + $0x8] sm:$0xff]
    %v2121 = vld [vmem:[#allocation3 + $0x10] sm:$0xff]
    %v2122 = vld [vmem:[#allocation3 + $0x18] sm:$0xff]
    %v2123 = vld [vmem:[#allocation3 + $0x20] sm:$0xff]
    %v2124 = vld [vmem:[#allocation3 + $0x28] sm:$0xff]
    %v2125 = vld [vmem:[#allocation3 + $0x30] sm:$0xff]
    %v2126 = vld [vmem:[#allocation3 + $0x38] sm:$0xff]
    %v2127 = vld [vmem:[#allocation3 + $0x40] sm:$0xff]
    %v2128 = vld [vmem:[#allocation3 + $0x48] sm:$0xff]
    %v2129 = vld [vmem:[#allocation3 + $0x50] sm:$0xff]
    %v2130 = vld [vmem:[#allocation3 + $0x58] sm:$0xff]
    %v2131 = vld [vmem:[#allocation3 + $0x60] sm:$0xff]
    %v2132 = vld [vmem:[#allocation3 + $0x68] sm:$0xff]
    %v2133 = vld [vmem:[#allocation3 + $0x70] sm:$0xff]
    %v2134 = vld [vmem:[#allocation3 + $0x78] sm:$0xff]
    %v2135 = vld [vmem:[#allocation3 + $0x80] sm:$0xff]
    %v2136 = vld [vmem:[#allocation3 + $0x88] sm:$0xff]
    %v2137 = vld [vmem:[#allocation3 + $0x90] sm:$0xff]
    %v2138 = vld [vmem:[#allocation3 + $0x98] sm:$0xff]
    %v2139 = vld [vmem:[#allocation3 + $0xa0] sm:$0xff]
    %v2140 = vld [vmem:[#allocation3 + $0xa8] sm:$0xff]
    %v2141 = vld [vmem:[#allocation3 + $0xb0] sm:$0xff]
    %v2142 = vld [vmem:[#allocation3 + $0xb8] sm:$0xff]
    %v2143 = vld [vmem:[#allocation3 + $0xc0] sm:$0xff]
    %v2144 = vld [vmem:[#allocation3 + $0xc8] sm:$0xff]
    %v2145 = vld [vmem:[#allocation3 + $0xd0] sm:$0xff]
    %v2146 = vld [vmem:[#allocation3 + $0xd8] sm:$0xff]
    %v2147 = vld [vmem:[#allocation3 + $0xe0] sm:$0xff]
    %v2148 = vld [vmem:[#allocation3 + $0xe8] sm:$0xff]
    %v2149 = vld [vmem:[#allocation3 + $0xf0] sm:$0xff]
    %v2150 = vld [vmem:[#allocation3 + $0xf8] sm:$0xff]
    %v2152 = vrot.slane %v2117, 3
    %v2186 = vunpack.c.l.b16 %v2119
    %v2187 = vunpack.c.h.b16 %v2119
    %v2188 = vunpack.c.l.b16 %v2120
    %v2189 = vunpack.c.h.b16 %v2120
    %v2190 = vunpack.c.l.b16 %v2121
    %v2191 = vunpack.c.h.b16 %v2121
    %v2192 = vunpack.c.l.b16 %v2122
    %v2193 = vunpack.c.h.b16 %v2122
    %v2194 = vunpack.c.l.b16 %v2123
    %v2195 = vunpack.c.h.b16 %v2123
    %v2196 = vunpack.c.l.b16 %v2124
    %v2197 = vunpack.c.h.b16 %v2124
    %v2198 = vunpack.c.l.b16 %v2125
    %v2199 = vunpack.c.h.b16 %v2125
    %v2200 = vunpack.c.l.b16 %v2126
    %v2201 = vunpack.c.h.b16 %v2126
    %v2202 = vunpack.c.l.b16 %v2127
    %v2203 = vunpack.c.h.b16 %v2127
    %v2204 = vunpack.c.l.b16 %v2128
    %v2205 = vunpack.c.h.b16 %v2128
    %v2206 = vunpack.c.l.b16 %v2129
    %v2207 = vunpack.c.h.b16 %v2129
    %v2208 = vunpack.c.l.b16 %v2130
    %v2209 = vunpack.c.h.b16 %v2130
    %v2210 = vunpack.c.l.b16 %v2131
    %v2211 = vunpack.c.h.b16 %v2131
    %v2212 = vunpack.c.l.b16 %v2132
    %v2213 = vunpack.c.h.b16 %v2132
    %v2214 = vunpack.c.l.b16 %v2133
    %v2215 = vunpack.c.h.b16 %v2133
    %v2216 = vunpack.c.l.b16 %v2134
    %v2217 = vunpack.c.h.b16 %v2134
    %v2218 = vunpack.c.l.b16 %v2135
    %v2219 = vunpack.c.h.b16 %v2135
    %v2220 = vunpack.c.l.b16 %v2136
    %v2221 = vunpack.c.h.b16 %v2136
    %v2222 = vunpack.c.l.b16 %v2137
    %v2223 = vunpack.c.h.b16 %v2137
    %v2224 = vunpack.c.l.b16 %v2138
    %v2225 = vunpack.c.h.b16 %v2138
    %v2226 = vunpack.c.l.b16 %v2139
    %v2227 = vunpack.c.h.b16 %v2139
    %v2228 = vunpack.c.l.b16 %v2140
    %v2229 = vunpack.c.h.b16 %v2140
    %v2230 = vunpack.c.l.b16 %v2141
    %v2231 = vunpack.c.h.b16 %v2141
    %v2232 = vunpack.c.l.b16 %v2142
    %v2233 = vunpack.c.h.b16 %v2142
    %v2234 = vunpack.c.l.b16 %v2143
    %v2235 = vunpack.c.h.b16 %v2143
    %v2236 = vunpack.c.l.b16 %v2144
    %v2237 = vunpack.c.h.b16 %v2144
    %v2238 = vunpack.c.l.b16 %v2145
    %v2239 = vunpack.c.h.b16 %v2145
    %v2240 = vunpack.c.l.b16 %v2146
    %v2241 = vunpack.c.h.b16 %v2146
    %v2242 = vunpack.c.l.b16 %v2147
    %v2243 = vunpack.c.h.b16 %v2147
    %v2244 = vunpack.c.l.b16 %v2148
    %v2245 = vunpack.c.h.b16 %v2148
    %v2246 = vunpack.c.l.b16 %v2149
    %v2247 = vunpack.c.h.b16 %v2149
    %v2248 = vunpack.c.l.b16 %v2150
    %v2249 = vunpack.c.h.b16 %v2150
    %v2250 = vpack.c.b16 %v2190, %v2186
    %v2251 = vpack.c.b16 %v2191, %v2187
    %v2252 = vpack.c.b16 %v2192, %v2188
    %v2253 = vpack.c.b16 %v2193, %v2189
    %v2254 = vpack.c.b16 %v2198, %v2194
    %v2255 = vpack.c.b16 %v2199, %v2195
    %v2256 = vpack.c.b16 %v2200, %v2196
    %v2257 = vpack.c.b16 %v2201, %v2197
    %v2258 = vpack.c.b16 %v2206, %v2202
    %v2259 = vpack.c.b16 %v2207, %v2203
    %v2260 = vpack.c.b16 %v2208, %v2204
    %v2261 = vpack.c.b16 %v2209, %v2205
    %v2262 = vpack.c.b16 %v2214, %v2210
    %v2263 = vpack.c.b16 %v2215, %v2211
    %v2264 = vpack.c.b16 %v2216, %v2212
    %v2265 = vpack.c.b16 %v2217, %v2213
    %v2266 = vpack.c.b16 %v2222, %v2218
    %v2267 = vpack.c.b16 %v2223, %v2219
    %v2268 = vpack.c.b16 %v2224, %v2220
    %v2269 = vpack.c.b16 %v2225, %v2221
    %v2270 = vpack.c.b16 %v2230, %v2226
    %v2271 = vpack.c.b16 %v2231, %v2227
    %v2272 = vpack.c.b16 %v2232, %v2228
    %v2273 = vpack.c.b16 %v2233, %v2229
    %v2274 = vpack.c.b16 %v2238, %v2234
    %v2275 = vpack.c.b16 %v2239, %v2235
    %v2276 = vpack.c.b16 %v2240, %v2236
    %v2277 = vpack.c.b16 %v2241, %v2237
    %v2278 = vpack.c.b16 %v2246, %v2242
    %v2279 = vpack.c.b16 %v2247, %v2243
    %v2280 = vpack.c.b16 %v2248, %v2244
    %v2281 = vpack.c.b16 %v2249, %v2245
    %2314 = vmatpush.bf16.msra.mxu0 %v2278
    %2315 = vmatpush.bf16.msra.mxu0 %v2274
    %2316 = vmatpush.bf16.msra.mxu0 %v2270
    %2317 = vmatpush.bf16.msra.mxu0 %v2266
    %2318 = vmatpush.bf16.msra.mxu0 %v2262
    %2319 = vmatpush.bf16.msra.mxu0 %v2258
    %2320 = vmatpush.bf16.msra.mxu0 %v2254
    %2321 = vmatpush.bf16.msra.mxu0 %v2250
    %2322 = vmatmul.bf16.gmra.mxu0 %v2152
    %v2323 = vpop.f32.mrf.mxu0
    %v2324 = vadd.f32 0.0, %v2323
    %v2325 = vpop.f32.mrf.mxu0
    %2326 = vdwg.mxu0
    %2327 = vmatpush.bf16.msra.mxu0 %v2279
    %2328 = vmatpush.bf16.msra.mxu0 %v2275
    %2329 = vmatpush.bf16.msra.mxu0 %v2271
    %2330 = vmatpush.bf16.msra.mxu0 %v2267
    %2331 = vmatpush.bf16.msra.mxu0 %v2263
    %2332 = vmatpush.bf16.msra.mxu0 %v2259
    %2333 = vmatpush.bf16.msra.mxu0 %v2255
    %2334 = vmatpush.bf16.msra.mxu0 %v2251
    %2335 = vmatmul.bf16.gmra.mxu0 %v2152
    %v2336 = vpop.f32.mrf.mxu0
    %v2337 = vadd.f32 0.0, %v2336
    %v2338 = vpop.f32.mrf.mxu0
    %2339 = vdwg.mxu0
    %2340 = vmatpush.bf16.msra.mxu0 %v2280
    %2341 = vmatpush.bf16.msra.mxu0 %v2276
    %2342 = vmatpush.bf16.msra.mxu0 %v2272
    %2343 = vmatpush.bf16.msra.mxu0 %v2268
    %2344 = vmatpush.bf16.msra.mxu0 %v2264
    %2345 = vmatpush.bf16.msra.mxu0 %v2260
    %2346 = vmatpush.bf16.msra.mxu0 %v2256
    %2347 = vmatpush.bf16.msra.mxu0 %v2252
    %2348 = vmatmul.bf16.gmra.mxu0 %v2152
    %v2349 = vpop.f32.mrf.mxu0
    %v2350 = vadd.f32 0.0, %v2349
    %v2351 = vpop.f32.mrf.mxu0
    %2352 = vdwg.mxu0
    %2353 = vmatpush.bf16.msra.mxu0 %v2281
    %2354 = vmatpush.bf16.msra.mxu0 %v2277
    %2355 = vmatpush.bf16.msra.mxu0 %v2273
    %2356 = vmatpush.bf16.msra.mxu0 %v2269
    %2357 = vmatpush.bf16.msra.mxu0 %v2265
    %2358 = vmatpush.bf16.msra.mxu0 %v2261
    %2359 = vmatpush.bf16.msra.mxu0 %v2257
    %2360 = vmatpush.bf16.msra.mxu0 %v2253
    %2361 = vmatmul.bf16.gmra.mxu0 %v2152
    %v2362 = vpop.f32.mrf.mxu0
    %v2363 = vadd.f32 0.0, %v2362
    %v2364 = vpop.f32.mrf.mxu0
    %2365 = vdwg.mxu0
    %v2370 = vrot.slane %v2324, 1
    %v2371 = vrot.slane %v2337, 1
    %v2372 = vrot.slane %v2350, 1
    %v2373 = vrot.slane %v2363, 1
    %v2378 = vadd.f32 %v91, %v2370
    %v2379 = vadd.f32 %v104, %v2371
    %v2380 = vadd.f32 %v117, %v2372
    %v2381 = vadd.f32 %v130, %v2373
    %v2382 = vmul.f32 %v2378, 0.5
    %v2383 = vmul.f32 %v2379, 0.5
    %v2384 = vmul.f32 %v2380, 0.5
    %v2385 = vtanh.pop %v2382
    %v2386 = vtanh.pop %v2383
    %v2387 = vtanh.pop %v2384
    %v2388 = vmul.f32 %v2385, 0.5
    %v2389 = vmul.f32 %v2386, 0.5
    %v2390 = vmul.f32 %v2387, 0.5
    %v2391 = vadd.f32 %v2388, 0.5
    %v2392 = vadd.f32 %v2389, 0.5
    %v2393 = vadd.f32 %v2390, 0.5
    %v2394 = vtanh.pop %v2381
    %v2396 = vrot.slane %v2114, 7
    %v2398 = vmul.f32 %v2392, %v2396
    %v2399 = vmul.f32 %v2391, %v2394
    %v2400 = vadd.f32 %v2398, %v2399
    %v2401 = vtanh.pop %v2400
    %v2402 = vmul.f32 %v2393, %v2401
    %2403 = vst [vmem:[#allocation2] sm:$0x80] %v2402
    %v2404 = vld [vmem:[#allocation2] sm:$0xff]
    %v2405 = vpack.c.bf16 %v2404, %v2404
    %v2406 = vld [vmem:[%s4] sm:$0xf]
    %v2407 = vld [vmem:[%s4 + $0x4] sm:$0xf]
    %v2408 = vld [vmem:[%s4 + $0x8] sm:$0xf]
    %v2409 = vld [vmem:[%s4 + $0xc] sm:$0xf]
    %v2410 = vld [vmem:[%s4 + $0x10] sm:$0xf]
    %v2411 = vld [vmem:[%s4 + $0x14] sm:$0xf]
    %v2412 = vld [vmem:[%s4 + $0x18] sm:$0xf]
    %v2413 = vld [vmem:[%s4 + $0x1c] sm:$0xf]
    %v2414 = vld [vmem:[%s4 + $0x20] sm:$0xf]
    %v2415 = vld [vmem:[%s4 + $0x24] sm:$0xf]
    %v2416 = vld [vmem:[%s4 + $0x28] sm:$0xf]
    %v2417 = vld [vmem:[%s4 + $0x2c] sm:$0xf]
    %v2418 = vld [vmem:[%s4 + $0x30] sm:$0xf]
    %v2419 = vld [vmem:[%s4 + $0x34] sm:$0xf]
    %v2420 = vld [vmem:[%s4 + $0x38] sm:$0xf]
    %v2421 = vld [vmem:[%s4 + $0x3c] sm:$0xf]
    %v2422 = vld [vmem:[%s5] sm:$0x1]
    %v2424 = vperm.slane %v2422, 0
    %v2442 = vunpack.c.l.b16 %v2406
    %v2443 = vunpack.c.l.b16 %v2407
    %v2444 = vunpack.c.l.b16 %v2408
    %v2445 = vunpack.c.l.b16 %v2409
    %v2446 = vunpack.c.l.b16 %v2410
    %v2447 = vunpack.c.l.b16 %v2411
    %v2448 = vunpack.c.l.b16 %v2412
    %v2449 = vunpack.c.l.b16 %v2413
    %v2450 = vunpack.c.l.b16 %v2414
    %v2451 = vunpack.c.l.b16 %v2415
    %v2452 = vunpack.c.l.b16 %v2416
    %v2453 = vunpack.c.l.b16 %v2417
    %v2454 = vunpack.c.l.b16 %v2418
    %v2455 = vunpack.c.l.b16 %v2419
    %v2456 = vunpack.c.l.b16 %v2420
    %v2457 = vunpack.c.l.b16 %v2421
    %v2458 = vpack.c.b16 %v2443, %v2442
    %v2459 = vpack.c.b16 %v2445, %v2444
    %v2460 = vpack.c.b16 %v2447, %v2446
    %v2461 = vpack.c.b16 %v2449, %v2448
    %v2462 = vpack.c.b16 %v2451, %v2450
    %v2463 = vpack.c.b16 %v2453, %v2452
    %v2464 = vpack.c.b16 %v2455, %v2454
    %v2465 = vpack.c.b16 %v2457, %v2456
    %2474 = vmatpush.bf16.msra.mxu0 %v2465
    %2475 = vmatpush.bf16.msra.mxu0 %v2464
    %2476 = vmatpush.bf16.msra.mxu0 %v2463
    %2477 = vmatpush.bf16.msra.mxu0 %v2462
    %2478 = vmatpush.bf16.msra.mxu0 %v2461
    %2479 = vmatpush.bf16.msra.mxu0 %v2460
    %2480 = vmatpush.bf16.msra.mxu0 %v2459
    %2481 = vmatpush.bf16.msra.mxu0 %v2458
    %2482 = vmatmul.bf16.gmra.mxu0 %v2405
    %v2483 = vpop.f32.mrf.mxu0
    %v2484 = vadd.f32 %v2424, %v2483
    %v2485 = vpop.f32.mrf.mxu0
    %2486 = vdwg.mxu0
    %2487 = vst.msk [vmem:[#allocation6] sm:$0xff] %vm77, %v2484
    // Predicated region
    $region30: #{lstm_forward.1} parent=1 // pred_check
      _
    $region31: #{lstm_forward.1} parent=1 // pred_check_branch
      %2489 = sbr.rel (0) target = $region33
    $region32: #{lstm_forward.1} parent=1 // pred_region
      %2491 = vsyncadd [#allocation5], 0
      %s2493 = sshll.u32 [#allocation6], 4
      %s2494 = int_to_ptr.vmem [resolvable:$true] %s2493
      %s2495 = sshll.u32 %s6, 4
      %s2496 = int_to_ptr.hbm [resolvable:$true] %s2495
      %2498 = dma.vmem_to_hbm [thread:$0]  %s2494, 128, %s2496, [#allocation5]
    $region33: #{lstm_forward.1} parent=1 // pred_fallthru
      _
    // Predicated region
    $region34: #{lstm_forward.1} parent=1 // pred_check
      _
    $region35: #{lstm_forward.1} parent=1 // pred_check_branch
      %2500 = sbr.rel (0) target = $region37
    $region36: #{lstm_forward.1} parent=1 // pred_region
      %2502 = dma.done [#allocation5], 128
    $region37: #{lstm_forward.1} parent=1 // pred_fallthru
      _
    %2503 = vsyncpa [#allocation4], 1
    %2504 = vsyncpa [#allocation5], 1

</llo_original>
